<compile_context>
chip_gen: v6e
topology: v6e:2x2x1
jax: 0.10.0
libtpu: 0.0.40
codegen_flags: <defaults>
</compile_context>

<pallas_src>
import functools

import jax
import jax.numpy as jnp
from jax import lax
from jax.experimental import pallas as pl
from jax.experimental.pallas import tpu as pltpu

KERNEL_SIZE = 13
PAD = 6     # Conv1d padding=6 with kernel 13 -> "same" output length
HALO = 16   # rows fetched from each neighbour tile (>= PAD, bf16 sublane-pack aligned)

_VMEM_CAPACITY = None
_BUFFERED_WEIGHTS_SUPPORTED = None


def _tpu_vmem_capacity():
    """Physical VMEM per TensorCore (falls back to 128 MiB if the query fails)."""
    global _VMEM_CAPACITY
    if _VMEM_CAPACITY is None:
        try:
            cap = int(pltpu.get_tpu_info().vmem_capacity_bytes)
        except Exception:
            cap = 0
        _VMEM_CAPACITY = cap if cap >= (32 << 20) else (128 << 20)
    return _VMEM_CAPACITY


def _weights_pipeline_kwargs():
    """{'pipeline_mode': pl.Buffered(1)} if single-buffered constant blocks are
    supported by this JAX/Mosaic build, else {} (default double buffering)."""
    global _BUFFERED_WEIGHTS_SUPPORTED
    if _BUFFERED_WEIGHTS_SUPPORTED is None:
        def _probe_kernel(x_ref, o_ref):
            o_ref[...] = x_ref[...]
        try:
            probe = pl.pallas_call(
                _probe_kernel,
                out_shape=jax.ShapeDtypeStruct((8, 128), jnp.float32),
                grid=(2,),
                in_specs=[pl.BlockSpec((8, 128), lambda i: (0, 0),
                                       pipeline_mode=pl.Buffered(1))],
                out_specs=pl.BlockSpec((8, 128), lambda i: (0, 0)),
            )
            jax.jit(probe).lower(jnp.zeros((8, 128), jnp.float32)).compile()
            _BUFFERED_WEIGHTS_SUPPORTED = True
        except Exception:
            _BUFFERED_WEIGHTS_SUPPORTED = False
    if _BUFFERED_WEIGHTS_SUPPORTED:
        return {"pipeline_mode": pl.Buffered(1)}
    return {}


def _pick_tile_n(n, batch, max_tile):
    """Sequence tile: multiple of 16 (bf16 packing); prefer a divisor of N."""
    max_tile = max(16, (max_tile // 16) * 16)
    if n <= max_tile:
        return ((n + 15) // 16) * 16                  # single (zero-padded) tile
    divisors = [tn for tn in range(max_tile, 15, -16) if n % tn == 0]
    if divisors:
        if batch % 2 == 1:
            # Prefer an even tile count (within 2x of the largest divisor) so both
            # v7x TensorCores get balanced work when the batch axis can't provide it.
            for tn in divisors:
                if (n // tn) % 2 == 0 and tn * 2 >= divisors[0]:
                    return tn
        return divisors[0]
    return max_tile                                   # ragged N: cdiv grid + zero-pad tail


def _decoder_kernel(xl_ref, xc_ref, xr_ref, cw_ref, cb_ref, hw_ref, hb_ref,
                    o_ref, win_ref, strip_ref):
    # xl_ref : (1, 16, D)    last 16 rows of the previous tile (left halo), bf16
    # xc_ref : (1, TN, D)    current tile of x, bf16
    # xr_ref : (1, 16, D)    first 16 rows of the next tile (right halo), bf16
    # cw_ref : (13*D, D)     conv weight in im2col (tap-major, in) layout, bf16
    # cb_ref : (1, D)        conv bias, f32
    # hw_ref : (D, NCp)      head weight (transposed, class dim padded to 128), bf16
    # hb_ref : (1, NCp)      head bias (class-padded), f32
    # o_ref  : (1, TN, NCp)  bf16 logits tile
    # win_ref  : (TN + 32, D)   scratch: tile + halos, bf16
    # strip_ref: (TN, 13*D)     scratch: im2col strip, bf16
    t = pl.program_id(1)
    n_t = pl.num_programs(1)
    tn = xc_ref.shape[1]
    d = xc_ref.shape[2]

    # ---- assemble the halo'ed window (all stores 16-row aligned for bf16) ----
    @pl.when(t > 0)
    def _():
        win_ref[0:HALO, :] = xl_ref[0]

    @pl.when(t == 0)
    def _():
        win_ref[0:HALO, :] = jnp.zeros((HALO, d), win_ref.dtype)

    win_ref[HALO:HALO + tn, :] = xc_ref[0]

    @pl.when(t < n_t - 1)
    def _():
        win_ref[HALO + tn:HALO + tn + HALO, :] = xr_ref[0]

    @pl.when(t == n_t - 1)
    def _():
        win_ref[HALO + tn:HALO + tn + HALO, :] = jnp.zeros((HALO, d),
                                                           win_ref.dtype)

    # ---- im2col: window row w holds global input row t*TN - 16 + w, so
    # output row i, tap k needs window row i + (HALO - PAD) + k = i + 10 + k.
    for k in range(KERNEL_SIZE):
        strip_ref[:, k * d:(k + 1) * d] = (
            win_ref[(HALO - PAD) + k:(HALO - PAD) + k + tn, :])

    # ---- conv as one long-K MXU matmul with f32 accumulation -----------------
    conv = jnp.dot(strip_ref[...], cw_ref[...],
                   preferred_element_type=jnp.float32)           # (TN, D) f32
    conv = jnp.maximum(conv + cb_ref[...], 0.0)                  # bias + ReLU

    # ---- classification head (bf16 MXU inputs, f32 accumulate) ---------------
    out = jnp.dot(conv.astype(jnp.bfloat16), hw_ref[...],
                  preferred_element_type=jnp.float32) + hb_ref[...]
    o_ref[0] = out.astype(o_ref.dtype)


def decoder_linear(x, conv_w, conv_b, head_w, head_b):
    """x: (B, N, D).  conv_w: torch layout (D, D, 13).  head_w: torch layout (n_cls, D).

    Returns (B, N, n_cls), matching DecoderLinear.forward on channels-last x.
    """
    B, N, D = x.shape
    n_cls = head_w.shape[0]
    ncp = ((n_cls + 127) // 128) * 128                 # lane-dense class dim

    cap = _tpu_vmem_capacity()
    max_tile = 256 if cap <= (64 << 20) else 512       # v7x vs v5e/v6e
    vmem_limit = min((cap * 3) // 4, 100 << 20)        # leave compiler headroom

    TN = _pick_tile_n(N, B, max_tile)
    n_t = pl.cdiv(N, TN)
    n_pad = n_t * TN
    blocks_per_tile = TN // HALO
    last_halo_blk = n_pad // HALO - 1

    # Parameter repacking (cheap one-off XLA ops; bf16 for the MXU).
    cw = jnp.transpose(conv_w, (2, 1, 0)).reshape(KERNEL_SIZE * D, D)
    cw = cw.astype(jnp.bfloat16)
    cb = conv_b.reshape(1, D).astype(jnp.float32)
    hw = jnp.zeros((D, ncp), jnp.bfloat16).at[:, :n_cls].set(
        head_w.T.astype(jnp.bfloat16))
    hb = jnp.zeros((1, ncp), jnp.float32).at[:, :n_cls].set(
        head_b.astype(jnp.float32))

    xb = x.astype(jnp.bfloat16)
    if n_pad != N:
        # Zero rows past N reproduce Conv1d's zero padding for the valid tail rows;
        # the extra output rows are sliced off below.
        xb = jnp.pad(xb, ((0, 0), (0, n_pad - N), (0, 0)))

    wk = _weights_pipeline_kwargs()    # single-buffer constant weight blocks if supported

    flops = 2 * B * n_pad * (KERNEL_SIZE * D * D + D * ncp)
    bytes_accessed = (xb.size * 2 + cw.size * 2 + hw.size * 2
                      + cb.size * 4 + hb.size * 4 + B * n_pad * ncp * 2)

    out = pl.pallas_call(
        _decoder_kernel,
        out_shape=jax.ShapeDtypeStruct((B, n_pad, ncp), jnp.bfloat16),
        grid_spec=pltpu.PrefetchScalarGridSpec(
            num_scalar_prefetch=0,
            grid=(B, n_t),
            in_specs=[
                # left halo: last 16 rows of the previous tile (clamped; masked at t==0)
                pl.BlockSpec((1, HALO, D),
                             lambda b, t: (b, jnp.maximum(t * blocks_per_tile - 1, 0), 0)),
                # current sequence tile
                pl.BlockSpec((1, TN, D), lambda b, t: (b, t, 0)),
                # right halo: first 16 rows of the next tile (clamped; masked at last t)
                pl.BlockSpec((1, HALO, D),
                             lambda b, t: (b, jnp.minimum((t + 1) * blocks_per_tile,
                                                          last_halo_blk), 0)),
                pl.BlockSpec((KERNEL_SIZE * D, D), lambda b, t: (0, 0), **wk),
                pl.BlockSpec((1, D), lambda b, t: (0, 0), **wk),
                pl.BlockSpec((D, ncp), lambda b, t: (0, 0), **wk),
                pl.BlockSpec((1, ncp), lambda b, t: (0, 0), **wk),
            ],
            out_specs=pl.BlockSpec((1, TN, ncp), lambda b, t: (b, t, 0)),
            scratch_shapes=[
                pltpu.VMEM((TN + 2 * HALO, D), jnp.bfloat16),
                pltpu.VMEM((TN, KERNEL_SIZE * D), jnp.bfloat16),
            ],
        ),
        compiler_params=pltpu.CompilerParams(
            dimension_semantics=("parallel", "parallel"),
            vmem_limit_bytes=int(vmem_limit),
        ),
        cost_estimate=pl.CostEstimate(flops=int(flops), transcendentals=0,
                                      bytes_accessed=int(bytes_accessed)),
    )(xb, xb, xb, cw, cb, hw, hb)

    # Slice off the class-lane / sequence padding and restore the caller dtype.
    return out[:, :N, :n_cls].astype(x.dtype)


def reference(x, conv_w, conv_b, head_w, head_b):
    """Pure-JAX f32 reference matching the PyTorch forward semantics."""
    x_ncw = jnp.transpose(x, (0, 2, 1))                        # (B, D, N)
    y = lax.conv_general_dilated(
        x_ncw, conv_w, window_strides=(1,), padding=[(PAD, PAD)],
        dimension_numbers=("NCH", "OIH", "NCH"))
    y = jnp.maximum(y + conv_b[None, :, None], 0.0)
    y = jnp.transpose(y, (0, 2, 1))                            # (B, N, D)
    return y @ head_w.T + head_b


if __name__ == "__main__":
    master_key = jax.random.PRNGKey(0)

    def run_case(case_idx, B, N, D, n_cls):
        key = jax.random.fold_in(master_key, case_idx)
        k1, k2, k3, k4, k5 = jax.random.split(key, 5)
        # Parameters in PyTorch layouts (Conv1d: (out, in, k); Linear: (n_cls, in)).
        conv_w = jax.random.normal(k1, (D, D, KERNEL_SIZE), jnp.float32) * 0.02
        conv_b = jax.random.normal(k2, (D,), jnp.float32) * 0.02
        head_w = jnp.clip(jax.random.normal(k3, (n_cls, D), jnp.float32) * 0.02,
                          -0.04, 0.04)
        head_b = jax.random.normal(k4, (n_cls,), jnp.float32) * 0.02
        x = jax.random.normal(k5, (B, N, D), jnp.float32)

        out = jax.jit(decoder_linear)(x, conv_w, conv_b, head_w, head_b)
        out = jax.block_until_ready(out)

        ref = reference(x, conv_w, conv_b, head_w, head_b)
        assert out.shape == (B, N, n_cls)
        err = float(jnp.max(jnp.abs(out - ref)))
        # bf16 MXU inputs / bf16 writeback with f32 accumulation -> loosened tolerance.
        assert jnp.allclose(out, ref, atol=2e-2, rtol=2e-2), (
            f"case {(B, N, D, n_cls)}: max abs err {err}")

    run_case(0, B=2, N=16, D=32, n_cls=8)   # N multiple of 16, no wrapper padding
    run_case(1, B=1, N=20, D=32, n_cls=5)   # ragged N (zero-pad tail) + odd class count

    print("KERNEL_OK")
</pallas_src>

<mosaic_0001>
module attributes {stable_mosaic.version = 11 : i64} {
  func.func @_decoder_kernel(%arg0: i32, %arg1: i32, %arg2: memref<1x16x32xbf16, #tpu.memory_space<vmem>>, %arg3: memref<1x16x32xbf16, #tpu.memory_space<vmem>>, %arg4: memref<1x16x32xbf16, #tpu.memory_space<vmem>>, %arg5: memref<416x32xbf16, #tpu.memory_space<vmem>>, %arg6: memref<1x32xf32, #tpu.memory_space<vmem>>, %arg7: memref<32x128xbf16, #tpu.memory_space<vmem>>, %arg8: memref<1x128xf32, #tpu.memory_space<vmem>>, %arg9: memref<1x16x128xbf16, #tpu.memory_space<vmem>>, %arg10: memref<48x32xbf16, #tpu.memory_space<vmem>>, %arg11: memref<16x416xbf16, #tpu.memory_space<vmem>>) attributes {dimension_semantics = [#tpu.dimension_semantics<parallel>, #tpu.dimension_semantics<parallel>], iteration_bounds = array<i64: 2, 1>, scalar_prefetch = 0 : i64, scratch_operands = 2 : i64, tpu.core_type = #tpu.core_type<tc>, window_params = [{transform_indices = @transform_0, window_bounds = array<i64: 1, 16, 32>}, {transform_indices = @transform_1, window_bounds = array<i64: 1, 16, 32>}, {transform_indices = @transform_2, window_bounds = array<i64: 1, 16, 32>}, {pipeline_mode = #tpu.pipeline_mode<synchronous>, transform_indices = @transform_3, window_bounds = array<i64: 416, 32>}, {pipeline_mode = #tpu.pipeline_mode<synchronous>, transform_indices = @transform_4, window_bounds = array<i64: 1, 32>}, {pipeline_mode = #tpu.pipeline_mode<synchronous>, transform_indices = @transform_5, window_bounds = array<i64: 32, 128>}, {pipeline_mode = #tpu.pipeline_mode<synchronous>, transform_indices = @transform_6, window_bounds = array<i64: 1, 128>}, {transform_indices = @transform_7, window_bounds = array<i64: 1, 16, 128>}]} {
    %c0_i32 = arith.constant 0 : i32
    %0 = arith.cmpi sgt, %arg1, %c0_i32 : i32
    %1 = arith.extui %0 : i1 to i32
    %c0_i32_0 = arith.constant 0 : i32
    %2 = arith.cmpi ne, %1, %c0_i32_0 : i32
    scf.if %2 {
      %c0_53 = arith.constant 0 : index
      %c0_54 = arith.constant 0 : index
      %c0_55 = arith.constant 0 : index
      %59 = vector.load %arg2[%c0_53, %c0_54, %c0_55] : memref<1x16x32xbf16, #tpu.memory_space<vmem>>, vector<1x16x32xbf16>
      %60 = vector.shape_cast %59 : vector<1x16x32xbf16> to vector<16x32xbf16>
      %c0_56 = arith.constant 0 : index
      %c0_57 = arith.constant 0 : index
      %61 = vector.load %arg10[%c0_56, %c0_57] : memref<48x32xbf16, #tpu.memory_space<vmem>>, vector<16x32xbf16>
      tpu.vector_store %arg10[%c0_56, %c0_57], %60 {strides = array<i32>} : memref<48x32xbf16, #tpu.memory_space<vmem>>, vector<16x32xbf16>,
    } else {
    }
    %c0_i32_1 = arith.constant 0 : i32
    %3 = arith.cmpi eq, %arg1, %c0_i32_1 : i32
    %4 = arith.extui %3 : i1 to i32
    %c0_i32_2 = arith.constant 0 : i32
    %5 = arith.cmpi ne, %4, %c0_i32_2 : i32
    scf.if %5 {
      %cst_53 = arith.constant 0.000000e+00 : bf16
      %59 = vector.broadcast %cst_53 : bf16 to vector<16x32xbf16>
      %c0_54 = arith.constant 0 : index
      %c0_55 = arith.constant 0 : index
      %60 = vector.load %arg10[%c0_54, %c0_55] : memref<48x32xbf16, #tpu.memory_space<vmem>>, vector<16x32xbf16>
      tpu.vector_store %arg10[%c0_54, %c0_55], %59 {strides = array<i32>} : memref<48x32xbf16, #tpu.memory_space<vmem>>, vector<16x32xbf16>,
    } else {
    }
    %c0 = arith.constant 0 : index
    %c0_3 = arith.constant 0 : index
    %c0_4 = arith.constant 0 : index
    %6 = vector.load %arg3[%c0, %c0_3, %c0_4] : memref<1x16x32xbf16, #tpu.memory_space<vmem>>, vector<1x16x32xbf16>
    %7 = vector.shape_cast %6 : vector<1x16x32xbf16> to vector<16x32xbf16>
    %c16 = arith.constant 16 : index
    %c0_5 = arith.constant 0 : index
    %8 = vector.load %arg10[%c16, %c0_5] : memref<48x32xbf16, #tpu.memory_space<vmem>>, vector<16x32xbf16>
    tpu.vector_store %arg10[%c16, %c0_5], %7 {strides = array<i32>} : memref<48x32xbf16, #tpu.memory_space<vmem>>, vector<16x32xbf16>,
    %c0_i32_6 = arith.constant 0 : i32
    %9 = arith.cmpi slt, %arg1, %c0_i32_6 : i32
    %10 = arith.extui %9 : i1 to i32
    %c0_i32_7 = arith.constant 0 : i32
    %11 = arith.cmpi ne, %10, %c0_i32_7 : i32
    scf.if %11 {
      %c0_53 = arith.constant 0 : index
      %c0_54 = arith.constant 0 : index
      %c0_55 = arith.constant 0 : index
      %59 = vector.load %arg4[%c0_53, %c0_54, %c0_55] : memref<1x16x32xbf16, #tpu.memory_space<vmem>>, vector<1x16x32xbf16>
      %60 = vector.shape_cast %59 : vector<1x16x32xbf16> to vector<16x32xbf16>
      %c32_56 = arith.constant 32 : index
      %c0_57 = arith.constant 0 : index
      %61 = vector.load %arg10[%c32_56, %c0_57] : memref<48x32xbf16, #tpu.memory_space<vmem>>, vector<16x32xbf16>
      tpu.vector_store %arg10[%c32_56, %c0_57], %60 {strides = array<i32>} : memref<48x32xbf16, #tpu.memory_space<vmem>>, vector<16x32xbf16>,
    } else {
    }
    %c0_i32_8 = arith.constant 0 : i32
    %12 = arith.cmpi eq, %arg1, %c0_i32_8 : i32
    %13 = arith.extui %12 : i1 to i32
    %c0_i32_9 = arith.constant 0 : i32
    %14 = arith.cmpi ne, %13, %c0_i32_9 : i32
    scf.if %14 {
      %cst_53 = arith.constant 0.000000e+00 : bf16
      %59 = vector.broadcast %cst_53 : bf16 to vector<16x32xbf16>
      %c32_54 = arith.constant 32 : index
      %c0_55 = arith.constant 0 : index
      %60 = vector.load %arg10[%c32_54, %c0_55] : memref<48x32xbf16, #tpu.memory_space<vmem>>, vector<16x32xbf16>
      tpu.vector_store %arg10[%c32_54, %c0_55], %59 {strides = array<i32>} : memref<48x32xbf16, #tpu.memory_space<vmem>>, vector<16x32xbf16>,
    } else {
    }
    %c10 = arith.constant 10 : index
    %c0_10 = arith.constant 0 : index
    %15 = vector.load %arg10[%c10, %c0_10] : memref<48x32xbf16, #tpu.memory_space<vmem>>, vector<16x32xbf16>
    %c0_11 = arith.constant 0 : index
    %c0_12 = arith.constant 0 : index
    %16 = vector.load %arg11[%c0_11, %c0_12] : memref<16x416xbf16, #tpu.memory_space<vmem>>, vector<16x32xbf16>
    tpu.vector_store %arg11[%c0_11, %c0_12], %15 {strides = array<i32>} : memref<16x416xbf16, #tpu.memory_space<vmem>>, vector<16x32xbf16>,
    %c11 = arith.constant 11 : index
    %c0_13 = arith.constant 0 : index
    %17 = vector.load %arg10[%c11, %c0_13] : memref<48x32xbf16, #tpu.memory_space<vmem>>, vector<16x32xbf16>
    %c0_14 = arith.constant 0 : index
    %c32 = arith.constant 32 : index
    %18 = vector.load %arg11[%c0_14, %c32] : memref<16x416xbf16, #tpu.memory_space<vmem>>, vector<16x32xbf16>
    tpu.vector_store %arg11[%c0_14, %c32], %17 {strides = array<i32>} : memref<16x416xbf16, #tpu.memory_space<vmem>>, vector<16x32xbf16>,
    %c12 = arith.constant 12 : index
    %c0_15 = arith.constant 0 : index
    %19 = vector.load %arg10[%c12, %c0_15] : memref<48x32xbf16, #tpu.memory_space<vmem>>, vector<16x32xbf16>
    %c0_16 = arith.constant 0 : index
    %c64 = arith.constant 64 : index
    %20 = vector.load %arg11[%c0_16, %c64] : memref<16x416xbf16, #tpu.memory_space<vmem>>, vector<16x32xbf16>
    tpu.vector_store %arg11[%c0_16, %c64], %19 {strides = array<i32>} : memref<16x416xbf16, #tpu.memory_space<vmem>>, vector<16x32xbf16>,
    %c13 = arith.constant 13 : index
    %c0_17 = arith.constant 0 : index
    %21 = vector.load %arg10[%c13, %c0_17] : memref<48x32xbf16, #tpu.memory_space<vmem>>, vector<16x32xbf16>
    %c0_18 = arith.constant 0 : index
    %c96 = arith.constant 96 : index
    %22 = vector.load %arg11[%c0_18, %c96] : memref<16x416xbf16, #tpu.memory_space<vmem>>, vector<16x32xbf16>
    tpu.vector_store %arg11[%c0_18, %c96], %21 {strides = array<i32>} : memref<16x416xbf16, #tpu.memory_space<vmem>>, vector<16x32xbf16>,
    %c14 = arith.constant 14 : index
    %c0_19 = arith.constant 0 : index
    %23 = vector.load %arg10[%c14, %c0_19] : memref<48x32xbf16, #tpu.memory_space<vmem>>, vector<16x32xbf16>
    %c0_20 = arith.constant 0 : index
    %c128 = arith.constant 128 : index
    %24 = vector.load %arg11[%c0_20, %c128] : memref<16x416xbf16, #tpu.memory_space<vmem>>, vector<16x32xbf16>
    tpu.vector_store %arg11[%c0_20, %c128], %23 {strides = array<i32>} : memref<16x416xbf16, #tpu.memory_space<vmem>>, vector<16x32xbf16>,
    %c15 = arith.constant 15 : index
    %c0_21 = arith.constant 0 : index
    %25 = vector.load %arg10[%c15, %c0_21] : memref<48x32xbf16, #tpu.memory_space<vmem>>, vector<16x32xbf16>
    %c0_22 = arith.constant 0 : index
    %c160 = arith.constant 160 : index
    %26 = vector.load %arg11[%c0_22, %c160] : memref<16x416xbf16, #tpu.memory_space<vmem>>, vector<16x32xbf16>
    tpu.vector_store %arg11[%c0_22, %c160], %25 {strides = array<i32>} : memref<16x416xbf16, #tpu.memory_space<vmem>>, vector<16x32xbf16>,
    %c16_23 = arith.constant 16 : index
    %c0_24 = arith.constant 0 : index
    %27 = vector.load %arg10[%c16_23, %c0_24] : memref<48x32xbf16, #tpu.memory_space<vmem>>, vector<16x32xbf16>
    %c0_25 = arith.constant 0 : index
    %c192 = arith.constant 192 : index
    %28 = vector.load %arg11[%c0_25, %c192] : memref<16x416xbf16, #tpu.memory_space<vmem>>, vector<16x32xbf16>
    tpu.vector_store %arg11[%c0_25, %c192], %27 {strides = array<i32>} : memref<16x416xbf16, #tpu.memory_space<vmem>>, vector<16x32xbf16>,
    %c17 = arith.constant 17 : index
    %c0_26 = arith.constant 0 : index
    %29 = vector.load %arg10[%c17, %c0_26] : memref<48x32xbf16, #tpu.memory_space<vmem>>, vector<16x32xbf16>
    %c0_27 = arith.constant 0 : index
    %c224 = arith.constant 224 : index
    %30 = vector.load %arg11[%c0_27, %c224] : memref<16x416xbf16, #tpu.memory_space<vmem>>, vector<16x32xbf16>
    tpu.vector_store %arg11[%c0_27, %c224], %29 {strides = array<i32>} : memref<16x416xbf16, #tpu.memory_space<vmem>>, vector<16x32xbf16>,
    %c18 = arith.constant 18 : index
    %c0_28 = arith.constant 0 : index
    %31 = vector.load %arg10[%c18, %c0_28] : memref<48x32xbf16, #tpu.memory_space<vmem>>, vector<16x32xbf16>
    %c0_29 = arith.constant 0 : index
    %c256 = arith.constant 256 : index
    %32 = vector.load %arg11[%c0_29, %c256] : memref<16x416xbf16, #tpu.memory_space<vmem>>, vector<16x32xbf16>
    tpu.vector_store %arg11[%c0_29, %c256], %31 {strides = array<i32>} : memref<16x416xbf16, #tpu.memory_space<vmem>>, vector<16x32xbf16>,
    %c19 = arith.constant 19 : index
    %c0_30 = arith.constant 0 : index
    %33 = vector.load %arg10[%c19, %c0_30] : memref<48x32xbf16, #tpu.memory_space<vmem>>, vector<16x32xbf16>
    %c0_31 = arith.constant 0 : index
    %c288 = arith.constant 288 : index
    %34 = vector.load %arg11[%c0_31, %c288] : memref<16x416xbf16, #tpu.memory_space<vmem>>, vector<16x32xbf16>
    tpu.vector_store %arg11[%c0_31, %c288], %33 {strides = array<i32>} : memref<16x416xbf16, #tpu.memory_space<vmem>>, vector<16x32xbf16>,
    %c20 = arith.constant 20 : index
    %c0_32 = arith.constant 0 : index
    %35 = vector.load %arg10[%c20, %c0_32] : memref<48x32xbf16, #tpu.memory_space<vmem>>, vector<16x32xbf16>
    %c0_33 = arith.constant 0 : index
    %c320 = arith.constant 320 : index
    %36 = vector.load %arg11[%c0_33, %c320] : memref<16x416xbf16, #tpu.memory_space<vmem>>, vector<16x32xbf16>
    tpu.vector_store %arg11[%c0_33, %c320], %35 {strides = array<i32>} : memref<16x416xbf16, #tpu.memory_space<vmem>>, vector<16x32xbf16>,
    %c21 = arith.constant 21 : index
    %c0_34 = arith.constant 0 : index
    %37 = vector.load %arg10[%c21, %c0_34] : memref<48x32xbf16, #tpu.memory_space<vmem>>, vector<16x32xbf16>
    %c0_35 = arith.constant 0 : index
    %c352 = arith.constant 352 : index
    %38 = vector.load %arg11[%c0_35, %c352] : memref<16x416xbf16, #tpu.memory_space<vmem>>, vector<16x32xbf16>
    tpu.vector_store %arg11[%c0_35, %c352], %37 {strides = array<i32>} : memref<16x416xbf16, #tpu.memory_space<vmem>>, vector<16x32xbf16>,
    %c22 = arith.constant 22 : index
    %c0_36 = arith.constant 0 : index
    %39 = vector.load %arg10[%c22, %c0_36] : memref<48x32xbf16, #tpu.memory_space<vmem>>, vector<16x32xbf16>
    %c0_37 = arith.constant 0 : index
    %c384 = arith.constant 384 : index
    %40 = vector.load %arg11[%c0_37, %c384] : memref<16x416xbf16, #tpu.memory_space<vmem>>, vector<16x32xbf16>
    tpu.vector_store %arg11[%c0_37, %c384], %39 {strides = array<i32>} : memref<16x416xbf16, #tpu.memory_space<vmem>>, vector<16x32xbf16>,
    %c0_38 = arith.constant 0 : index
    %c0_39 = arith.constant 0 : index
    %41 = vector.load %arg11[%c0_38, %c0_39] : memref<16x416xbf16, #tpu.memory_space<vmem>>, vector<16x416xbf16>
    %c0_40 = arith.constant 0 : index
    %c0_41 = arith.constant 0 : index
    %42 = vector.load %arg5[%c0_40, %c0_41] : memref<416x32xbf16, #tpu.memory_space<vmem>>, vector<416x32xbf16>
    %cst = arith.constant dense<0.000000e+00> : vector<16x32xf32>
    %43 = tpu.matmul %41, %42, %cst {dimension_numbers = #tpu.dot_dimension_numbers<[1], [0], [0], [1], [0, 0, 1, 1], [], []>} : vector<16x416xbf16>, vector<416x32xbf16>, vector<16x32xf32> -> vector<16x32xf32>
    %c0_42 = arith.constant 0 : index
    %c0_43 = arith.constant 0 : index
    %44 = vector.load %arg6[%c0_42, %c0_43] : memref<1x32xf32, #tpu.memory_space<vmem>>, vector<1x32xf32>
    %45 = vector.broadcast %44 : vector<1x32xf32> to vector<16x32xf32>
    %46 = arith.addf %43, %45 : vector<16x32xf32>
    %cst_44 = arith.constant 0.000000e+00 : f32
    %47 = vector.broadcast %cst_44 : f32 to vector<16x32xf32>
    %48 = arith.maximumf %46, %47 : vector<16x32xf32>
    %49 = arith.truncf %48 : vector<16x32xf32> to vector<16x32xbf16>
    %c0_45 = arith.constant 0 : index
    %c0_46 = arith.constant 0 : index
    %50 = vector.load %arg7[%c0_45, %c0_46] : memref<32x128xbf16, #tpu.memory_space<vmem>>, vector<32x128xbf16>
    %cst_47 = arith.constant dense<0.000000e+00> : vector<16x128xf32>
    %51 = tpu.matmul %49, %50, %cst_47 {dimension_numbers = #tpu.dot_dimension_numbers<[1], [0], [0], [1], [0, 0, 1, 1], [], []>} : vector<16x32xbf16>, vector<32x128xbf16>, vector<16x128xf32> -> vector<16x128xf32>
    %c0_48 = arith.constant 0 : index
    %c0_49 = arith.constant 0 : index
    %52 = vector.load %arg8[%c0_48, %c0_49] : memref<1x128xf32, #tpu.memory_space<vmem>>, vector<1x128xf32>
    %53 = vector.broadcast %52 : vector<1x128xf32> to vector<16x128xf32>
    %54 = arith.addf %51, %53 : vector<16x128xf32>
    %55 = arith.truncf %54 : vector<16x128xf32> to vector<16x128xbf16>
    %c0_50 = arith.constant 0 : index
    %c0_51 = arith.constant 0 : index
    %c0_52 = arith.constant 0 : index
    %56 = vector.load %arg9[%c0_50, %c0_51, %c0_52] : memref<1x16x128xbf16, #tpu.memory_space<vmem>>, vector<1x16x128xbf16>
    %57 = vector.shape_cast %56 : vector<1x16x128xbf16> to vector<16x128xbf16>
    %58 = vector.shape_cast %55 : vector<16x128xbf16> to vector<1x16x128xbf16>
    tpu.vector_store %arg9[%c0_50, %c0_51, %c0_52], %58 {strides = array<i32>} : memref<1x16x128xbf16, #tpu.memory_space<vmem>>, vector<1x16x128xbf16>,
    return
  }
  func.func @transform_0(%arg0: i32, %arg1: i32) -> (i32, i32, i32) {
    %c1_i32 = arith.constant 1 : i32
    %0 = arith.muli %arg1, %c1_i32 : i32
    %c1_i32_0 = arith.constant 1 : i32
    %1 = arith.subi %0, %c1_i32_0 : i32
    %c0_i32 = arith.constant 0 : i32
    %2 = arith.maxsi %1, %c0_i32 : i32
    %c0_i32_1 = arith.constant 0 : i32
    %c0_i32_2 = arith.constant 0 : i32
    return %arg0, %2, %c0_i32_1 : i32, i32, i32
  }
  func.func @transform_1(%arg0: i32, %arg1: i32) -> (i32, i32, i32) {
    %c0_i32 = arith.constant 0 : i32
    %c0_i32_0 = arith.constant 0 : i32
    return %arg0, %arg1, %c0_i32 : i32, i32, i32
  }
  func.func @transform_2(%arg0: i32, %arg1: i32) -> (i32, i32, i32) {
    %c1_i32 = arith.constant 1 : i32
    %0 = arith.addi %arg1, %c1_i32 : i32
    %c1_i32_0 = arith.constant 1 : i32
    %1 = arith.muli %0, %c1_i32_0 : i32
    %c0_i32 = arith.constant 0 : i32
    %2 = arith.minsi %1, %c0_i32 : i32
    %c0_i32_1 = arith.constant 0 : i32
    %c0_i32_2 = arith.constant 0 : i32
    return %arg0, %2, %c0_i32_1 : i32, i32, i32
  }
  func.func @transform_3(%arg0: i32, %arg1: i32) -> (i32, i32) {
    %c0_i32 = arith.constant 0 : i32
    %c0_i32_0 = arith.constant 0 : i32
    %c0_i32_1 = arith.constant 0 : i32
    return %c0_i32, %c0_i32_0 : i32, i32
  }
  func.func @transform_4(%arg0: i32, %arg1: i32) -> (i32, i32) {
    %c0_i32 = arith.constant 0 : i32
    %c0_i32_0 = arith.constant 0 : i32
    %c0_i32_1 = arith.constant 0 : i32
    return %c0_i32, %c0_i32_0 : i32, i32
  }
  func.func @transform_5(%arg0: i32, %arg1: i32) -> (i32, i32) {
    %c0_i32 = arith.constant 0 : i32
    %c0_i32_0 = arith.constant 0 : i32
    %c0_i32_1 = arith.constant 0 : i32
    return %c0_i32, %c0_i32_0 : i32, i32
  }
  func.func @transform_6(%arg0: i32, %arg1: i32) -> (i32, i32) {
    %c0_i32 = arith.constant 0 : i32
    %c0_i32_0 = arith.constant 0 : i32
    %c0_i32_1 = arith.constant 0 : i32
    return %c0_i32, %c0_i32_0 : i32, i32
  }
  func.func @transform_7(%arg0: i32, %arg1: i32) -> (i32, i32, i32) {
    %c0_i32 = arith.constant 0 : i32
    %c0_i32_0 = arith.constant 0 : i32
    return %arg0, %arg1, %c0_i32 : i32, i32, i32
  }
}

</mosaic_0001>

<llo_original>
// kernel: decoder_linear.1
$region0: #{decoder_linear.1}
  #allocation0 [shape = 'u32[]', space=smem, size = 0x4, offset = 0x4, fixed_abs, tag = 'smem constant byte address 0x4 - core index']
  #allocation1 [shape = 'u32[144,128]{1,0:T(1,128)}', space=vmem, size = 0x12000, scoped, tag = 'internal scratch']
  #allocation2 [shape = 'bf16[48,32]{1,0:T(8,128)(2,1)}', space=vmem, size = 0x3000, scoped, tag = 'scratch operand']
  #allocation3 [shape = 'bf16[16,416]{1,0:T(8,128)(2,1)}', space=vmem, size = 0x4000, scoped, tag = 'scratch operand']
  %s0 = inlined_call_operand.vmem [shape: bf16[2,16,32], index: 0, kind: input, shape index: {}, may-alias: {0,1,2}]
  %s1 = inlined_call_operand.vmem [shape: bf16[2,16,32], index: 1, kind: input, shape index: {}, may-alias: {0,1,2}]
  %s2 = inlined_call_operand.vmem [shape: bf16[2,16,32], index: 2, kind: input, shape index: {}, may-alias: {0,1,2}]
  %s3 = inlined_call_operand.vmem [shape: bf16[416,32], index: 3, kind: input, shape index: {}]
  %s4 = inlined_call_operand.vmem [shape: f32[1,32], index: 4, kind: input, shape index: {}]
  %s5 = inlined_call_operand.vmem [shape: bf16[32,128], index: 5, kind: input, shape index: {}]
  %s6 = inlined_call_operand.vmem [shape: f32[1,128], index: 6, kind: input, shape index: {}]
  %s7 = inlined_call_operand.vmem [shape: bf16[2,16,128], index: 7, kind: output, shape index: {}]
  %s8 = sld [smem:[#allocation0]]
  $region77: #{decoder_linear.1} parent=0
    _
  %s10 = ssub.s32 1, %s8
  %s11 = scalar_select 0, %s10, %s8
  loop: start=0, step=1, limit=4
  $region2: #{decoder_linear.1} parent=0 // loop_pre_header
    _
  $region3: #{decoder_linear.1} parent=0 // loop_header
    %s13 = sphi 0, %s17
    %p14 = scmp.ge.s32.totalorder %s13, 4
    %s20 = sphi 0, %s32
    %s21 = sphi 0, %s28
    %s22 = sphi 0, %s20
    %s23 = sphi 0, %s21
    %s24 = sphi 0, %s22
    %s25 = sphi 0, %s23
    %s43 = sphi 0, %s45
    %s46 = sphi 0, %s43
    %s47 = sphi 0, %s46
    %s63 = sphi 0, %s47
    %s71 = sphi 0, %s73
    %s74 = sphi 0, %s71
    %s75 = sphi 0, %s74
    %s91 = sphi 0, %s75
    %s105 = sphi 0, %s107
    %s108 = sphi 0, %s105
    %s109 = sphi 0, %s108
    %s125 = sphi 0, %s109
    %s129 = sphi 0, %s129
    %s131 = sphi 0, %s129
    %s132 = sphi 0, %s131
    %s146 = sphi 0, %s132
    %s150 = sphi 0, %s150
    %s152 = sphi 0, %s150
    %s153 = sphi 0, %s152
    %s167 = sphi 0, %s153
    %s171 = sphi 0, %s171
    %s173 = sphi 0, %s171
    %s174 = sphi 0, %s173
    %s188 = sphi 0, %s174
    %s192 = sphi 0, %s192
    %s194 = sphi 0, %s192
    %s195 = sphi 0, %s194
    %s209 = sphi 0, %s195
    %s217 = sphi 0, %s219
    %s220 = sphi 0, %s217
    %s221 = sphi 0, %s220
    %s237 = sphi 0, %s221
  $region4: #{decoder_linear.1} parent=0 // loop_header_branch
    %16 = sbr.rel (%p14) target = $region8
  $region5: #{decoder_linear.1} parent=0 // loop_body
    %s18 = ssub.s32 %s13, 1
    %s19 = ssub.s32 %s13, 2
    %s26 = sadd.s32 1, %s21
    %p27 = scmp.ge.s32.totalorder %s26, 1
    %s28 = scalar_select %p27, 0, %s26
    %s29 = sadd.s32 1, %s20
    %s30 = scalar_select %p27, %s29, %s20
    %p31 = scmp.ge.s32.totalorder %s30, 2
    %s32 = scalar_select %p31, 0, %s30
    %s33 = ssub.s32 %s21, 1
    %p34 = scmp.gt.s32.totalorder %s33, 0
    %s35 = scalar_select %p34, %s33, 0
    %s36 = ssub.s32 %s28, 1
    %p37 = scmp.gt.s32.totalorder %s36, 0
    %s38 = scalar_select %p37, %s36, 0
    %s39 = ssub.s32 %s20, %s32
    %s40 = ssub.s32 %s35, %s38
    %s41 = sor.u32 %s39, %s40
    %p42 = scmp.eq.s32.totalorder %s41, 0
    %s44 = sadd.s32 %s43, 1
    %s45 = scalar_select %p42, %s43, %s44
    %p48 = pneg %p42
    %p49 = scmp.eq.s32.totalorder %s13, 1
    %p50 = por %p48, %p49
    %p51 = scmp.ne.s32.totalorder %s43, %s46
    %p52 = scmp.eq.s32.totalorder %s13, 0
    %p53 = por %p51, %p52
    %p54 = scmp.ne.s32.totalorder %s43, %s46
    %p55 = scmp.eq.s32.totalorder %s18, 1
    %p56 = por %p54, %p55
    %p57 = scmp.ne.s32.totalorder %s46, %s47
    %p58 = scmp.eq.s32.totalorder %s18, 0
    %p59 = por %p57, %p58
    %p60 = scmp.ne.s32.totalorder %s46, %s47
    %p61 = scmp.eq.s32.totalorder %s19, 1
    %p62 = por %p60, %p61
    %p64 = scmp.ne.s32.totalorder %s47, %s63
    %p65 = scmp.eq.s32.totalorder %s19, 0
    %p66 = por %p64, %p65
    %s67 = ssub.s32 %s20, %s32
    %s68 = ssub.s32 %s21, %s28
    %s69 = sor.u32 %s67, %s68
    %p70 = scmp.eq.s32.totalorder %s69, 0
    %s72 = sadd.s32 %s71, 1
    %s73 = scalar_select %p70, %s71, %s72
    %p76 = pneg %p70
    %p77 = scmp.eq.s32.totalorder %s13, 1
    %p78 = por %p76, %p77
    %p79 = scmp.ne.s32.totalorder %s71, %s74
    %p80 = scmp.eq.s32.totalorder %s13, 0
    %p81 = por %p79, %p80
    %p82 = scmp.ne.s32.totalorder %s71, %s74
    %p83 = scmp.eq.s32.totalorder %s18, 1
    %p84 = por %p82, %p83
    %p85 = scmp.ne.s32.totalorder %s74, %s75
    %p86 = scmp.eq.s32.totalorder %s18, 0
    %p87 = por %p85, %p86
    %p88 = scmp.ne.s32.totalorder %s74, %s75
    %p89 = scmp.eq.s32.totalorder %s19, 1
    %p90 = por %p88, %p89
    %p92 = scmp.ne.s32.totalorder %s75, %s91
    %p93 = scmp.eq.s32.totalorder %s19, 0
    %p94 = por %p92, %p93
    %s95 = sadd.s32 %s21, 1
    %p96 = scmp.lt.s32.totalorder %s95, 0
    %s97 = scalar_select %p96, %s95, 0
    %s98 = sadd.s32 %s28, 1
    %p99 = scmp.lt.s32.totalorder %s98, 0
    %s100 = scalar_select %p99, %s98, 0
    %s101 = ssub.s32 %s20, %s32
    %s102 = ssub.s32 %s97, %s100
    %s103 = sor.u32 %s101, %s102
    %p104 = scmp.eq.s32.totalorder %s103, 0
    %s106 = sadd.s32 %s105, 1
    %s107 = scalar_select %p104, %s105, %s106
    %p110 = pneg %p104
    %p111 = scmp.eq.s32.totalorder %s13, 1
    %p112 = por %p110, %p111
    %p113 = scmp.ne.s32.totalorder %s105, %s108
    %p114 = scmp.eq.s32.totalorder %s13, 0
    %p115 = por %p113, %p114
    %p116 = scmp.ne.s32.totalorder %s105, %s108
    %p117 = scmp.eq.s32.totalorder %s18, 1
    %p118 = por %p116, %p117
    %p119 = scmp.ne.s32.totalorder %s108, %s109
    %p120 = scmp.eq.s32.totalorder %s18, 0
    %p121 = por %p119, %p120
    %p122 = scmp.ne.s32.totalorder %s108, %s109
    %p123 = scmp.eq.s32.totalorder %s19, 1
    %p124 = por %p122, %p123
    %p126 = scmp.ne.s32.totalorder %s109, %s125
    %p127 = scmp.eq.s32.totalorder %s19, 0
    %p128 = por %p126, %p127
    %s130 = sadd.s32 %s129, 1
    %p133 = scmp.eq.s32.totalorder %s13, 1
    %p134 = scmp.ne.s32.totalorder %s129, %s131
    %p135 = scmp.eq.s32.totalorder %s13, 0
    %p136 = por %p134, %p135
    %p137 = scmp.ne.s32.totalorder %s129, %s131
    %p138 = scmp.eq.s32.totalorder %s18, 1
    %p139 = por %p137, %p138
    %p140 = scmp.ne.s32.totalorder %s131, %s132
    %p141 = scmp.eq.s32.totalorder %s18, 0
    %p142 = por %p140, %p141
    %p143 = scmp.ne.s32.totalorder %s131, %s132
    %p144 = scmp.eq.s32.totalorder %s19, 1
    %p145 = por %p143, %p144
    %p147 = scmp.ne.s32.totalorder %s132, %s146
    %p148 = scmp.eq.s32.totalorder %s19, 0
    %p149 = por %p147, %p148
    %s151 = sadd.s32 %s150, 1
    %p154 = scmp.eq.s32.totalorder %s13, 1
    %p155 = scmp.ne.s32.totalorder %s150, %s152
    %p156 = scmp.eq.s32.totalorder %s13, 0
    %p157 = por %p155, %p156
    %p158 = scmp.ne.s32.totalorder %s150, %s152
    %p159 = scmp.eq.s32.totalorder %s18, 1
    %p160 = por %p158, %p159
    %p161 = scmp.ne.s32.totalorder %s152, %s153
    %p162 = scmp.eq.s32.totalorder %s18, 0
    %p163 = por %p161, %p162
    %p164 = scmp.ne.s32.totalorder %s152, %s153
    %p165 = scmp.eq.s32.totalorder %s19, 1
    %p166 = por %p164, %p165
    %p168 = scmp.ne.s32.totalorder %s153, %s167
    %p169 = scmp.eq.s32.totalorder %s19, 0
    %p170 = por %p168, %p169
    %s172 = sadd.s32 %s171, 1
    %p175 = scmp.eq.s32.totalorder %s13, 1
    %p176 = scmp.ne.s32.totalorder %s171, %s173
    %p177 = scmp.eq.s32.totalorder %s13, 0
    %p178 = por %p176, %p177
    %p179 = scmp.ne.s32.totalorder %s171, %s173
    %p180 = scmp.eq.s32.totalorder %s18, 1
    %p181 = por %p179, %p180
    %p182 = scmp.ne.s32.totalorder %s173, %s174
    %p183 = scmp.eq.s32.totalorder %s18, 0
    %p184 = por %p182, %p183
    %p185 = scmp.ne.s32.totalorder %s173, %s174
    %p186 = scmp.eq.s32.totalorder %s19, 1
    %p187 = por %p185, %p186
    %p189 = scmp.ne.s32.totalorder %s174, %s188
    %p190 = scmp.eq.s32.totalorder %s19, 0
    %p191 = por %p189, %p190
    %s193 = sadd.s32 %s192, 1
    %p196 = scmp.eq.s32.totalorder %s13, 1
    %p197 = scmp.ne.s32.totalorder %s192, %s194
    %p198 = scmp.eq.s32.totalorder %s13, 0
    %p199 = por %p197, %p198
    %p200 = scmp.ne.s32.totalorder %s192, %s194
    %p201 = scmp.eq.s32.totalorder %s18, 1
    %p202 = por %p200, %p201
    %p203 = scmp.ne.s32.totalorder %s194, %s195
    %p204 = scmp.eq.s32.totalorder %s18, 0
    %p205 = por %p203, %p204
    %p206 = scmp.ne.s32.totalorder %s194, %s195
    %p207 = scmp.eq.s32.totalorder %s19, 1
    %p208 = por %p206, %p207
    %p210 = scmp.ne.s32.totalorder %s195, %s209
    %p211 = scmp.eq.s32.totalorder %s19, 0
    %p212 = por %p210, %p211
    %s213 = ssub.s32 %s20, %s32
    %s214 = ssub.s32 %s21, %s28
    %s215 = sor.u32 %s213, %s214
    %p216 = scmp.eq.s32.totalorder %s215, 0
    %s218 = sadd.s32 %s217, 1
    %s219 = scalar_select %p216, %s217, %s218
    %p222 = pneg %p216
    %p223 = scmp.eq.s32.totalorder %s13, 1
    %p224 = por %p222, %p223
    %p225 = scmp.ne.s32.totalorder %s217, %s220
    %p226 = scmp.eq.s32.totalorder %s13, 0
    %p227 = por %p225, %p226
    %p228 = scmp.ne.s32.totalorder %s217, %s220
    %p229 = scmp.eq.s32.totalorder %s18, 1
    %p230 = por %p228, %p229
    %p231 = scmp.ne.s32.totalorder %s220, %s221
    %p232 = scmp.eq.s32.totalorder %s18, 0
    %p233 = por %p231, %p232
    %p234 = scmp.ne.s32.totalorder %s220, %s221
    %p235 = scmp.eq.s32.totalorder %s19, 1
    %p236 = por %p234, %p235
    %p238 = scmp.ne.s32.totalorder %s221, %s237
    %p239 = scmp.eq.s32.totalorder %s19, 0
    %p240 = por %p238, %p239
    %p241 = scmp.le.s32.totalorder 1, %s13
    %p242 = scmp.lt.s32.totalorder %s13, 3
    %p243 = pnand %p241, %p242
    %p244 = pneg %p243
    // Predicated region
    $region9: #{decoder_linear.1} parent=5 // pred_check
      _
    $region10: #{decoder_linear.1} parent=5 // pred_check_branch
      %246 = sbr.rel (%p243) target = $region12
    $region11: #{decoder_linear.1} parent=5 // pred_region
      %s247 = ssub.s32 %s13, 1
      // Predicated region
      $region13: #{decoder_linear.1} parent=11 // pred_check
        %p248 = pneg %p142
      $region14: #{decoder_linear.1} parent=11 // pred_check_branch
        %250 = sbr.rel (%p248) target = $region16
      $region15: #{decoder_linear.1} parent=11 // pred_region
        _
      $region16: #{decoder_linear.1} parent=11 // pred_fallthru
        _
      // Predicated region
      $region17: #{decoder_linear.1} parent=11 // pred_check
        %p251 = pneg %p163
      $region18: #{decoder_linear.1} parent=11 // pred_check_branch
        %253 = sbr.rel (%p251) target = $region20
      $region19: #{decoder_linear.1} parent=11 // pred_region
        _
      $region20: #{decoder_linear.1} parent=11 // pred_fallthru
        _
      // Predicated region
      $region21: #{decoder_linear.1} parent=11 // pred_check
        %p254 = pneg %p184
      $region22: #{decoder_linear.1} parent=11 // pred_check_branch
        %256 = sbr.rel (%p254) target = $region24
      $region23: #{decoder_linear.1} parent=11 // pred_region
        _
      $region24: #{decoder_linear.1} parent=11 // pred_fallthru
        _
      // Predicated region
      $region25: #{decoder_linear.1} parent=11 // pred_check
        %p257 = pneg %p205
      $region26: #{decoder_linear.1} parent=11 // pred_check_branch
        %259 = sbr.rel (%p257) target = $region28
      $region27: #{decoder_linear.1} parent=11 // pred_region
        _
      $region28: #{decoder_linear.1} parent=11 // pred_fallthru
        _
    $region12: #{decoder_linear.1} parent=5 // pred_fallthru
      _
    %p260 = scmp.lt.s32.totalorder %s13, 2
    // Predicated region
    $region29: #{decoder_linear.1} parent=5 // pred_check
      %p261 = pneg %p260
    $region30: #{decoder_linear.1} parent=5 // pred_check_branch
      %263 = sbr.rel (%p261) target = $region32
    $region31: #{decoder_linear.1} parent=5 // pred_region
      // Predicated region
      $region33: #{decoder_linear.1} parent=31 // pred_check
        %p264 = pneg %p53
      $region34: #{decoder_linear.1} parent=31 // pred_check_branch
        %266 = sbr.rel (%p264) target = $region36
      $region35: #{decoder_linear.1} parent=31 // pred_region
        %s267 = ssub.s32 %s21, 1
        %p268 = scmp.gt.s32.totalorder %s267, 0
        %s269 = scalar_select %p268, %s267, 0
        %s270 = smul.u32 2, %s269
        %p271 = scmp.lt.s32.totalorder %s20, 1
        %s272 = scalar_select %p271, %s20, 1
        %p273 = scmp.lt.s32.totalorder %s270, 1
        %s274 = scalar_select %p273, %s270, 1
        %s275 = smul.addr %s272, 2
        %s276 = sadd.s32 %s274, %s275
        %s277 = smul.addr %s276, 4
        %s278 = scalar_lea.vmem %s0, %s277
        %s279 = ssub.s32 %s21, 1
        %p280 = scmp.gt.s32.totalorder %s279, 0
        %s281 = scalar_select %p280, %s279, 0
        %s282 = smul.u32 2, %s281
      $region36: #{decoder_linear.1} parent=31 // pred_fallthru
        _
      // Predicated region
      $region37: #{decoder_linear.1} parent=31 // pred_check
        %p283 = pneg %p81
      $region38: #{decoder_linear.1} parent=31 // pred_check_branch
        %285 = sbr.rel (%p283) target = $region40
      $region39: #{decoder_linear.1} parent=31 // pred_region
        %s286 = smul.u32 2, %s21
        %p287 = scmp.lt.s32.totalorder %s20, 1
        %s288 = scalar_select %p287, %s20, 1
        %p289 = scmp.lt.s32.totalorder %s286, 1
        %s290 = scalar_select %p289, %s286, 1
        %s291 = smul.addr %s288, 2
        %s292 = sadd.s32 %s290, %s291
        %s293 = smul.addr %s292, 4
        %s294 = scalar_lea.vmem %s1, %s293
        %s295 = smul.u32 2, %s21
      $region40: #{decoder_linear.1} parent=31 // pred_fallthru
        _
      // Predicated region
      $region41: #{decoder_linear.1} parent=31 // pred_check
        %p296 = pneg %p115
      $region42: #{decoder_linear.1} parent=31 // pred_check_branch
        %298 = sbr.rel (%p296) target = $region44
      $region43: #{decoder_linear.1} parent=31 // pred_region
        %s299 = sadd.s32 %s21, 1
        %p300 = scmp.lt.s32.totalorder %s299, 0
        %s301 = scalar_select %p300, %s299, 0
        %s302 = smul.u32 2, %s301
        %p303 = scmp.lt.s32.totalorder %s20, 1
        %s304 = scalar_select %p303, %s20, 1
        %p305 = scmp.lt.s32.totalorder %s302, 1
        %s306 = scalar_select %p305, %s302, 1
        %s307 = smul.addr %s304, 2
        %s308 = sadd.s32 %s306, %s307
        %s309 = smul.addr %s308, 4
        %s310 = scalar_lea.vmem %s2, %s309
        %s311 = sadd.s32 %s21, 1
        %p312 = scmp.lt.s32.totalorder %s311, 0
        %s313 = scalar_select %p312, %s311, 0
        %s314 = smul.u32 2, %s313
      $region44: #{decoder_linear.1} parent=31 // pred_fallthru
        _
    $region32: #{decoder_linear.1} parent=5 // pred_fallthru
      _
    %p315 = scmp.le.s32.totalorder 1, %s13
    %p316 = scmp.lt.s32.totalorder %s13, 3
    %p317 = pnand %p315, %p316
    %p318 = pneg %p317
    // Predicated region
    $region45: #{decoder_linear.1} parent=5 // pred_check
      _
    $region46: #{decoder_linear.1} parent=5 // pred_check_branch
      %320 = sbr.rel (%p317) target = $region48
    $region47: #{decoder_linear.1} parent=5 // pred_region
      %s321 = ssub.s32 %s13, 1
      %s322 = ssub.s32 %s23, 1
      %p323 = scmp.gt.s32.totalorder %s322, 0
      %s324 = scalar_select %p323, %s322, 0
      %s325 = smul.u32 2, %s324
      %p326 = scmp.lt.s32.totalorder %s22, 1
      %s327 = scalar_select %p326, %s22, 1
      %p328 = scmp.lt.s32.totalorder %s325, 1
      %s329 = scalar_select %p328, %s325, 1
      %s330 = smul.addr %s327, 2
      %s331 = sadd.s32 %s329, %s330
      %s332 = smul.addr %s331, 4
      %s333 = scalar_lea.vmem %s0, %s332
      %p334 = pneg %p59
      %p335 = pneg %p56
      %s336 = smul.u32 2, %s23
      %p337 = scmp.lt.s32.totalorder %s22, 1
      %s338 = scalar_select %p337, %s22, 1
      %p339 = scmp.lt.s32.totalorder %s336, 1
      %s340 = scalar_select %p339, %s336, 1
      %s341 = smul.addr %s338, 2
      %s342 = sadd.s32 %s340, %s341
      %s343 = smul.addr %s342, 4
      %s344 = scalar_lea.vmem %s1, %s343
      %p345 = pneg %p87
      %p346 = pneg %p84
      %s347 = sadd.s32 %s23, 1
      %p348 = scmp.lt.s32.totalorder %s347, 0
      %s349 = scalar_select %p348, %s347, 0
      %s350 = smul.u32 2, %s349
      %p351 = scmp.lt.s32.totalorder %s22, 1
      %s352 = scalar_select %p351, %s22, 1
      %p353 = scmp.lt.s32.totalorder %s350, 1
      %s354 = scalar_select %p353, %s350, 1
      %s355 = smul.addr %s352, 2
      %s356 = sadd.s32 %s354, %s355
      %s357 = smul.addr %s356, 4
      %s358 = scalar_lea.vmem %s2, %s357
      %p359 = pneg %p121
      %p360 = pneg %p118
      %p361 = pneg %p142
      %p362 = pneg %p139
      %p363 = pneg %p163
      %p364 = pneg %p160
      %p365 = pneg %p184
      %p366 = pneg %p181
      %p367 = pneg %p205
      %p368 = pneg %p202
      %p369 = pneg %p233
      %p370 = pneg %p230
      %s371 = smul.u32 2, %s23
      %p372 = scmp.lt.s32.totalorder %s22, 1
      %s373 = scalar_select %p372, %s22, 1
      %p374 = scmp.lt.s32.totalorder %s371, 1
      %s375 = scalar_select %p374, %s371, 1
      %s376 = smul.addr %s373, 2
      %s377 = sadd.s32 %s375, %s376
      %s378 = smul.addr %s377, 4
      %s379 = scalar_lea.vmem %s7, %s378
      %s380 = ssub.s32 %s23, 1
      %p381 = scmp.gt.s32.totalorder %s380, 0
      %s382 = scalar_select %p381, %s380, 0
      %s383 = smul.u32 2, %s382
      %p384 = scmp.lt.s32.totalorder %s22, 1
      %s385 = scalar_select %p384, %s22, 1
      %p386 = scmp.lt.s32.totalorder %s383, 1
      %s387 = scalar_select %p386, %s383, 1
      %s388 = smul.addr %s385, 2
      %s389 = sadd.s32 %s387, %s388
      %s390 = smul.addr %s389, 4
      %s391 = scalar_lea.vmem %s0, %s390
      %s392 = ssub.s32 %s23, 1
      %p393 = scmp.gt.s32.totalorder %s392, 0
      %s394 = scalar_select %p393, %s392, 0
      %s395 = smul.u32 2, %s394
      %s396 = smul.u32 2, %s23
      %p397 = scmp.lt.s32.totalorder %s22, 1
      %s398 = scalar_select %p397, %s22, 1
      %p399 = scmp.lt.s32.totalorder %s396, 1
      %s400 = scalar_select %p399, %s396, 1
      %s401 = smul.addr %s398, 2
      %s402 = sadd.s32 %s400, %s401
      %s403 = smul.addr %s402, 4
      %s404 = scalar_lea.vmem %s1, %s403
      %s405 = smul.u32 2, %s23
      %s406 = sadd.s32 %s23, 1
      %p407 = scmp.lt.s32.totalorder %s406, 0
      %s408 = scalar_select %p407, %s406, 0
      %s409 = smul.u32 2, %s408
      %p410 = scmp.lt.s32.totalorder %s22, 1
      %s411 = scalar_select %p410, %s22, 1
      %p412 = scmp.lt.s32.totalorder %s409, 1
      %s413 = scalar_select %p412, %s409, 1
      %s414 = smul.addr %s411, 2
      %s415 = sadd.s32 %s413, %s414
      %s416 = smul.addr %s415, 4
      %s417 = scalar_lea.vmem %s2, %s416
      %s418 = sadd.s32 %s23, 1
      %p419 = scmp.lt.s32.totalorder %s418, 0
      %s420 = scalar_select %p419, %s418, 0
      %s421 = smul.u32 2, %s420
      %s422 = smul.u32 2, %s23
      %p423 = scmp.lt.s32.totalorder %s22, 1
      %s424 = scalar_select %p423, %s22, 1
      %p425 = scmp.lt.s32.totalorder %s422, 1
      %s426 = scalar_select %p425, %s422, 1
      %s427 = smul.addr %s424, 2
      %s428 = sadd.s32 %s426, %s427
      %s429 = smul.addr %s428, 4
      %s430 = scalar_lea.vmem %s7, %s429
      %s431 = smul.u32 2, %s23
      %p433 = scmp.gt.s32.totalorder %s23, 0
      // Predicated region
      $region49: #{decoder_linear.1} parent=47 // pred_check
        %p434 = pneg %p433
      $region50: #{decoder_linear.1} parent=47 // pred_check_branch
        %436 = sbr.rel (%p434) target = $region52
      $region51: #{decoder_linear.1} parent=47 // pred_region
        %v437 = vld [vmem:[%s391] sm:$0xf]
        %v438 = vld [vmem:[%s391 + $0x4] sm:$0xf]
        %vm439 = vcmask 257024
        %440 = vst.msk [vmem:[#allocation2] sm:$0xf] %vm439, %v437
        %441 = vst.msk [vmem:[#allocation2 + $0x4] sm:$0xf] %vm439, %v438
      $region52: #{decoder_linear.1} parent=47 // pred_fallthru
        _
      %p442 = scmp.eq.s32.totalorder %s23, 0
      // Predicated region
      $region53: #{decoder_linear.1} parent=47 // pred_check
        %p443 = pneg %p442
      $region54: #{decoder_linear.1} parent=47 // pred_check_branch
        %445 = sbr.rel (%p443) target = $region56
      $region55: #{decoder_linear.1} parent=47 // pred_region
        %vm446 = vcmask 257024
        %447 = vst.msk [vmem:[#allocation2] sm:$0xf] %vm446, 0
        %448 = vst.msk [vmem:[#allocation2 + $0x4] sm:$0xf] %vm446, 0
      $region56: #{decoder_linear.1} parent=47 // pred_fallthru
        _
      %v449 = vld [vmem:[%s404] sm:$0xf]
      %v450 = vld [vmem:[%s404 + $0x4] sm:$0xf]
      %vm451 = vcmask 257024
      %452 = vst.msk [vmem:[#allocation2 + $0x8] sm:$0xf] %vm451, %v449
      %453 = vst.msk [vmem:[#allocation2 + $0xc] sm:$0xf] %vm451, %v450
      %p454 = scmp.lt.s32.totalorder %s23, 0
      // Predicated region
      $region57: #{decoder_linear.1} parent=47 // pred_check
        %p455 = pneg %p454
      $region58: #{decoder_linear.1} parent=47 // pred_check_branch
        %457 = sbr.rel (%p455) target = $region60
      $region59: #{decoder_linear.1} parent=47 // pred_region
        %v458 = vld [vmem:[%s417] sm:$0xf]
        %v459 = vld [vmem:[%s417 + $0x4] sm:$0xf]
        %460 = vst.msk [vmem:[#allocation2 + $0x10] sm:$0xf] %vm451, %v458
        %461 = vst.msk [vmem:[#allocation2 + $0x14] sm:$0xf] %vm451, %v459
      $region60: #{decoder_linear.1} parent=47 // pred_fallthru
        _
      // Predicated region
      $region61: #{decoder_linear.1} parent=47 // pred_check
        %p462 = pneg %p442
      $region62: #{decoder_linear.1} parent=47 // pred_check_branch
        %464 = sbr.rel (%p462) target = $region64
      $region63: #{decoder_linear.1} parent=47 // pred_region
        %465 = vst.msk [vmem:[#allocation2 + $0x10] sm:$0xf] %vm451, 0
        %466 = vst.msk [vmem:[#allocation2 + $0x14] sm:$0xf] %vm451, 0
      $region64: #{decoder_linear.1} parent=47 // pred_fallthru
        _
      %v467 = vld [vmem:[#allocation2 + $0x4] sm:$0xe]
      %v468 = vld [vmem:[#allocation2 + $0x8] sm:$0xf]
      %v469 = vld [vmem:[#allocation2 + $0xc] sm:$0x1]
      %vm473 = vcmask 1042432
      %vm474 = vcmask 1046532
      %vm475 = vmor %vm473, %vm474
      %v476 = vrot.slane %v467, 5
      %v477 = vrot.slane %v476, 4
      %v478 = vrot.slane %v468, 5
      %v479 = vsel %vm475, %v477, %v478
      %v480 = vrot.slane %v478, 4
      %v481 = vrot.slane %v469, 5
      %v482 = vsel %vm475, %v480, %v481
      %485 = vst.msk [vmem:[#allocation3] sm:$0xf] %vm451, %v479
      %486 = vst.msk [vmem:[#allocation3 + $0x10] sm:$0xf] %vm451, %v482
      %v487 = vld [vmem:[#allocation2 + $0x4] sm:$0xe]
      %v488 = vld [vmem:[#allocation2 + $0x8] sm:$0xf]
      %v489 = vld [vmem:[#allocation2 + $0xc] sm:$0x3]
      %vm490 = vsmask.f32 2304
      %vm491 = vsmask.f32 6416
      %vm492 = vmor %vm490, %vm491
      %v494 = vshrl.u32 %v487, 16
      %v496 = vrot.slane %v494, 5
      %v497 = vshll.u32 %v487, 16
      %v499 = vrot.slane %v497, 6
      %v500 = vor.u32 %v496, %v499
      %v501 = vrot.slane %v500, 4
      %v503 = vshrl.u32 %v488, 16
      %v505 = vrot.slane %v503, 5
      %v506 = vshll.u32 %v488, 16
      %v508 = vrot.slane %v506, 6
      %v509 = vor.u32 %v505, %v508
      %v510 = vsel %vm492, %v501, %v509
      %v511 = vrot.slane %v509, 4
      %v513 = vshrl.u32 %v489, 16
      %v515 = vrot.slane %v513, 5
      %v516 = vshll.u32 %v489, 16
      %v518 = vrot.slane %v516, 6
      %v519 = vor.u32 %v515, %v518
      %v520 = vsel %vm492, %v511, %v519
      %521 = vrot.lane.b32.xlu0 %v510, 32
      %v522 = vpop.permute.xlu0 %521
      %523 = vrot.lane.b32.xlu0 %v520, 32
      %v524 = vpop.permute.xlu0 %523
      %vm527 = vcmask 519424
      %528 = vst.msk [vmem:[#allocation3] sm:$0xf] %vm527, %v522
      %529 = vst.msk [vmem:[#allocation3 + $0x10] sm:$0xf] %vm527, %v524
      %v530 = vld [vmem:[#allocation2 + $0x4] sm:$0xc]
      %v531 = vld [vmem:[#allocation2 + $0x8] sm:$0xf]
      %v532 = vld [vmem:[#allocation2 + $0xc] sm:$0x3]
      %vm536 = vcmask 1041408
      %vm537 = vcmask 1045508
      %vm538 = vmor %vm536, %vm537
      %v539 = vrot.slane %v530, 6
      %v540 = vrot.slane %v539, 4
      %v541 = vrot.slane %v531, 6
      %v542 = vsel %vm538, %v540, %v541
      %v543 = vrot.slane %v541, 4
      %v544 = vrot.slane %v532, 6
      %v545 = vsel %vm538, %v543, %v544
      %546 = vrot.lane.b32.xlu0 %v542, 64
      %v547 = vpop.permute.xlu0 %546
      %548 = vrot.lane.b32.xlu0 %v545, 64
      %v549 = vpop.permute.xlu0 %548
      %vm552 = vcmask 781824
      %553 = vst.msk [vmem:[#allocation3] sm:$0xf] %vm552, %v547
      %554 = vst.msk [vmem:[#allocation3 + $0x10] sm:$0xf] %vm552, %v549
      %v555 = vld [vmem:[#allocation2 + $0x4] sm:$0xc]
      %v556 = vld [vmem:[#allocation2 + $0x8] sm:$0xf]
      %v557 = vld [vmem:[#allocation2 + $0xc] sm:$0x7]
      %vm558 = vsmask.f32 1280
      %vm559 = vsmask.f32 5392
      %vm560 = vmor %vm558, %vm559
      %v562 = vshrl.u32 %v555, 16
      %v564 = vrot.slane %v562, 6
      %v565 = vshll.u32 %v555, 16
      %v567 = vrot.slane %v565, 7
      %v568 = vor.u32 %v564, %v567
      %v569 = vrot.slane %v568, 4
      %v571 = vshrl.u32 %v556, 16
      %v573 = vrot.slane %v571, 6
      %v574 = vshll.u32 %v556, 16
      %v576 = vrot.slane %v574, 7
      %v577 = vor.u32 %v573, %v576
      %v578 = vsel %vm560, %v569, %v577
      %v579 = vrot.slane %v577, 4
      %v581 = vshrl.u32 %v557, 16
      %v583 = vrot.slane %v581, 6
      %v584 = vshll.u32 %v557, 16
      %v586 = vrot.slane %v584, 7
      %v587 = vor.u32 %v583, %v586
      %v588 = vsel %vm560, %v579, %v587
      %589 = vrot.lane.b32.xlu0 %v578, 96
      %v590 = vpop.permute.xlu0 %589
      %591 = vrot.lane.b32.xlu0 %v588, 96
      %v592 = vpop.permute.xlu0 %591
      %vm595 = vcmask 1044224
      %596 = vst.msk [vmem:[#allocation3] sm:$0xf] %vm595, %v590
      %597 = vst.msk [vmem:[#allocation3 + $0x10] sm:$0xf] %vm595, %v592
      %v598 = vld [vmem:[#allocation2 + $0x4] sm:$0x8]
      %v599 = vld [vmem:[#allocation2 + $0x8] sm:$0xf]
      %v600 = vld [vmem:[#allocation2 + $0xc] sm:$0x7]
      %vm604 = vcmask 1040384
      %vm605 = vcmask 1044484
      %vm606 = vmor %vm604, %vm605
      %v607 = vrot.slane %v598, 7
      %v608 = vrot.slane %v607, 4
      %v609 = vrot.slane %v599, 7
      %v610 = vsel %vm606, %v608, %v609
      %v611 = vrot.slane %v609, 4
      %v612 = vrot.slane %v600, 7
      %v613 = vsel %vm606, %v611, %v612
      %616 = vst.msk [vmem:[#allocation3 + $0x4] sm:$0xf] %vm451, %v610
      %617 = vst.msk [vmem:[#allocation3 + $0x14] sm:$0xf] %vm451, %v613
      %v618 = vld [vmem:[#allocation2 + $0x4] sm:$0x8]
      %v619 = vld [vmem:[#allocation2 + $0x8] sm:$0xf]
      %v620 = vld [vmem:[#allocation2 + $0xc] sm:$0xf]
      %vm621 = vsmask.f32 256
      %vm622 = vsmask.f32 4368
      %vm623 = vmor %vm621, %vm622
      %v625 = vshrl.u32 %v618, 16
      %v627 = vrot.slane %v625, 7
      %v628 = vrot.slane %v627, 4
      %v630 = vshrl.u32 %v619, 16
      %v632 = vrot.slane %v630, 7
      %v633 = vshll.u32 %v619, 16
      %v635 = vor.u32 %v632, %v633
      %v636 = vsel %vm623, %v628, %v635
      %v637 = vrot.slane %v632, 4
      %v639 = vshrl.u32 %v620, 16
      %v641 = vrot.slane %v639, 7
      %v642 = vshll.u32 %v620, 16
      %v644 = vor.u32 %v641, %v642
      %v645 = vsel %vm623, %v637, %v644
      %646 = vrot.lane.b32.xlu0 %v636, 32
      %v647 = vpop.permute.xlu0 %646
      %648 = vrot.lane.b32.xlu0 %v645, 32
      %v649 = vpop.permute.xlu0 %648
      %652 = vst.msk [vmem:[#allocation3 + $0x4] sm:$0xf] %vm527, %v647
      %653 = vst.msk [vmem:[#allocation3 + $0x14] sm:$0xf] %vm527, %v649
      %v654 = vld [vmem:[#allocation2 + $0x8] sm:$0xf]
      %v655 = vld [vmem:[#allocation2 + $0xc] sm:$0xf]
      %658 = vrot.lane.b32.xlu0 %v654, 64
      %v659 = vpop.permute.xlu0 %658
      %660 = vrot.lane.b32.xlu0 %v655, 64
      %v661 = vpop.permute.xlu0 %660
      %664 = vst.msk [vmem:[#allocation3 + $0x4] sm:$0xf] %vm552, %v659
      %665 = vst.msk [vmem:[#allocation3 + $0x14] sm:$0xf] %vm552, %v661
      %v666 = vld [vmem:[#allocation2 + $0x8] sm:$0xf]
      %v667 = vld [vmem:[#allocation2 + $0xc] sm:$0xf]
      %v668 = vld [vmem:[#allocation2 + $0x10] sm:$0x1]
      %vm669 = vsmask.f32 3328
      %vm670 = vsmask.f32 7440
      %vm671 = vmor %vm669, %vm670
      %v673 = vshrl.u32 %v666, 16
      %v675 = vrot.slane %v673, 4
      %v676 = vshll.u32 %v666, 16
      %v678 = vrot.slane %v676, 5
      %v679 = vor.u32 %v675, %v678
      %v680 = vrot.slane %v679, 4
      %v682 = vshll.u32 %v667, 16
      %v684 = vrot.slane %v682, 5
      %v685 = vsel %vm671, %v680, %v684
      %v686 = vshrl.u32 %v667, 16
      %v688 = vrot.slane %v686, 4
      %v689 = vor.u32 %v688, %v684
      %v690 = vrot.slane %v689, 4
      %v692 = vshll.u32 %v668, 16
      %v694 = vrot.slane %v692, 5
      %v695 = vsel %vm671, %v690, %v694
      %696 = vrot.lane.b32.xlu0 %v685, 96
      %v697 = vpop.permute.xlu0 %696
      %698 = vrot.lane.b32.xlu0 %v695, 96
      %v699 = vpop.permute.xlu0 %698
      %702 = vst.msk [vmem:[#allocation3 + $0x4] sm:$0xf] %vm595, %v697
      %703 = vst.msk [vmem:[#allocation3 + $0x14] sm:$0xf] %vm595, %v699
      %v704 = vld [vmem:[#allocation2 + $0x8] sm:$0xe]
      %v705 = vld [vmem:[#allocation2 + $0xc] sm:$0xf]
      %v706 = vld [vmem:[#allocation2 + $0x10] sm:$0x1]
      %v710 = vrot.slane %v704, 5
      %v711 = vrot.slane %v710, 4
      %v712 = vrot.slane %v705, 5
      %v713 = vsel %vm475, %v711, %v712
      %v714 = vrot.slane %v712, 4
      %v715 = vrot.slane %v706, 5
      %v716 = vsel %vm475, %v714, %v715
      %719 = vst.msk [vmem:[#allocation3 + $0x8] sm:$0xf] %vm451, %v713
      %720 = vst.msk [vmem:[#allocation3 + $0x18] sm:$0xf] %vm451, %v716
      %v721 = vld [vmem:[#allocation2 + $0x8] sm:$0xe]
      %v722 = vld [vmem:[#allocation2 + $0xc] sm:$0xf]
      %v723 = vld [vmem:[#allocation2 + $0x10] sm:$0x3]
      %v725 = vshrl.u32 %v721, 16
      %v727 = vrot.slane %v725, 5
      %v728 = vshll.u32 %v721, 16
      %v730 = vrot.slane %v728, 6
      %v731 = vor.u32 %v727, %v730
      %v732 = vrot.slane %v731, 4
      %v734 = vshrl.u32 %v722, 16
      %v736 = vrot.slane %v734, 5
      %v737 = vshll.u32 %v722, 16
      %v739 = vrot.slane %v737, 6
      %v740 = vor.u32 %v736, %v739
      %v741 = vsel %vm492, %v732, %v740
      %v742 = vrot.slane %v740, 4
      %v744 = vshrl.u32 %v723, 16
      %v746 = vrot.slane %v744, 5
      %v747 = vshll.u32 %v723, 16
      %v749 = vrot.slane %v747, 6
      %v750 = vor.u32 %v746, %v749
      %v751 = vsel %vm492, %v742, %v750
      %752 = vrot.lane.b32.xlu0 %v741, 32
      %v753 = vpop.permute.xlu0 %752
      %754 = vrot.lane.b32.xlu0 %v751, 32
      %v755 = vpop.permute.xlu0 %754
      %758 = vst.msk [vmem:[#allocation3 + $0x8] sm:$0xf] %vm527, %v753
      %759 = vst.msk [vmem:[#allocation3 + $0x18] sm:$0xf] %vm527, %v755
      %v760 = vld [vmem:[#allocation2 + $0x8] sm:$0xc]
      %v761 = vld [vmem:[#allocation2 + $0xc] sm:$0xf]
      %v762 = vld [vmem:[#allocation2 + $0x10] sm:$0x3]
      %v766 = vrot.slane %v760, 6
      %v767 = vrot.slane %v766, 4
      %v768 = vrot.slane %v761, 6
      %v769 = vsel %vm538, %v767, %v768
      %v770 = vrot.slane %v768, 4
      %v771 = vrot.slane %v762, 6
      %v772 = vsel %vm538, %v770, %v771
      %773 = vrot.lane.b32.xlu0 %v769, 64
      %v774 = vpop.permute.xlu0 %773
      %775 = vrot.lane.b32.xlu0 %v772, 64
      %v776 = vpop.permute.xlu0 %775
      %779 = vst.msk [vmem:[#allocation3 + $0x8] sm:$0xf] %vm552, %v774
      %780 = vst.msk [vmem:[#allocation3 + $0x18] sm:$0xf] %vm552, %v776
      %v781 = vld [vmem:[#allocation2 + $0x8] sm:$0xc]
      %v782 = vld [vmem:[#allocation2 + $0xc] sm:$0xf]
      %v783 = vld [vmem:[#allocation2 + $0x10] sm:$0x7]
      %v785 = vshrl.u32 %v781, 16
      %v787 = vrot.slane %v785, 6
      %v788 = vshll.u32 %v781, 16
      %v790 = vrot.slane %v788, 7
      %v791 = vor.u32 %v787, %v790
      %v792 = vrot.slane %v791, 4
      %v794 = vshrl.u32 %v782, 16
      %v796 = vrot.slane %v794, 6
      %v797 = vshll.u32 %v782, 16
      %v799 = vrot.slane %v797, 7
      %v800 = vor.u32 %v796, %v799
      %v801 = vsel %vm560, %v792, %v800
      %v802 = vrot.slane %v800, 4
      %v804 = vshrl.u32 %v783, 16
      %v806 = vrot.slane %v804, 6
      %v807 = vshll.u32 %v783, 16
      %v809 = vrot.slane %v807, 7
      %v810 = vor.u32 %v806, %v809
      %v811 = vsel %vm560, %v802, %v810
      %812 = vrot.lane.b32.xlu0 %v801, 96
      %v813 = vpop.permute.xlu0 %812
      %814 = vrot.lane.b32.xlu0 %v811, 96
      %v815 = vpop.permute.xlu0 %814
      %818 = vst.msk [vmem:[#allocation3 + $0x8] sm:$0xf] %vm595, %v813
      %819 = vst.msk [vmem:[#allocation3 + $0x18] sm:$0xf] %vm595, %v815
      %v820 = vld [vmem:[#allocation2 + $0x8] sm:$0x8]
      %v821 = vld [vmem:[#allocation2 + $0xc] sm:$0xf]
      %v822 = vld [vmem:[#allocation2 + $0x10] sm:$0x7]
      %v826 = vrot.slane %v820, 7
      %v827 = vrot.slane %v826, 4
      %v828 = vrot.slane %v821, 7
      %v829 = vsel %vm606, %v827, %v828
      %v830 = vrot.slane %v828, 4
      %v831 = vrot.slane %v822, 7
      %v832 = vsel %vm606, %v830, %v831
      %835 = vst.msk [vmem:[#allocation3 + $0xc] sm:$0xf] %vm451, %v829
      %836 = vst.msk [vmem:[#allocation3 + $0x1c] sm:$0xf] %vm451, %v832
      %v837 = vld [vmem:[#allocation3] sm:$0xff]
      %v838 = vld [vmem:[#allocation3 + $0x8] sm:$0xff]
      %v839 = vld [vmem:[#allocation3 + $0x10] sm:$0xff]
      %v840 = vld [vmem:[#allocation3 + $0x18] sm:$0xff]
      %v841 = vld [vmem:[%s3] sm:$0xf]
      %v842 = vld [vmem:[%s3 + $0x4] sm:$0xf]
      %v843 = vld [vmem:[%s3 + $0x8] sm:$0xf]
      %v844 = vld [vmem:[%s3 + $0xc] sm:$0xf]
      %v845 = vld [vmem:[%s3 + $0x10] sm:$0xf]
      %v846 = vld [vmem:[%s3 + $0x14] sm:$0xf]
      %v847 = vld [vmem:[%s3 + $0x18] sm:$0xf]
      %v848 = vld [vmem:[%s3 + $0x1c] sm:$0xf]
      %v849 = vld [vmem:[%s3 + $0x20] sm:$0xf]
      %v850 = vld [vmem:[%s3 + $0x24] sm:$0xf]
      %v851 = vld [vmem:[%s3 + $0x28] sm:$0xf]
      %v852 = vld [vmem:[%s3 + $0x2c] sm:$0xf]
      %v853 = vld [vmem:[%s3 + $0x30] sm:$0xf]
      %v854 = vld [vmem:[%s3 + $0x34] sm:$0xf]
      %v855 = vld [vmem:[%s3 + $0x38] sm:$0xf]
      %v856 = vld [vmem:[%s3 + $0x3c] sm:$0xf]
      %v857 = vld [vmem:[%s3 + $0x40] sm:$0xf]
      %v858 = vld [vmem:[%s3 + $0x44] sm:$0xf]
      %v859 = vld [vmem:[%s3 + $0x48] sm:$0xf]
      %v860 = vld [vmem:[%s3 + $0x4c] sm:$0xf]
      %v861 = vld [vmem:[%s3 + $0x50] sm:$0xf]
      %v862 = vld [vmem:[%s3 + $0x54] sm:$0xf]
      %v863 = vld [vmem:[%s3 + $0x58] sm:$0xf]
      %v864 = vld [vmem:[%s3 + $0x5c] sm:$0xf]
      %v865 = vld [vmem:[%s3 + $0x60] sm:$0xf]
      %v866 = vld [vmem:[%s3 + $0x64] sm:$0xf]
      %v867 = vld [vmem:[%s3 + $0x68] sm:$0xf]
      %v868 = vld [vmem:[%s3 + $0x6c] sm:$0xf]
      %v869 = vld [vmem:[%s3 + $0x70] sm:$0xf]
      %v870 = vld [vmem:[%s3 + $0x74] sm:$0xf]
      %v871 = vld [vmem:[%s3 + $0x78] sm:$0xf]
      %v872 = vld [vmem:[%s3 + $0x7c] sm:$0xf]
      %v873 = vld [vmem:[%s3 + $0x80] sm:$0xf]
      %v874 = vld [vmem:[%s3 + $0x84] sm:$0xf]
      %v875 = vld [vmem:[%s3 + $0x88] sm:$0xf]
      %v876 = vld [vmem:[%s3 + $0x8c] sm:$0xf]
      %v877 = vld [vmem:[%s3 + $0x90] sm:$0xf]
      %v878 = vld [vmem:[%s3 + $0x94] sm:$0xf]
      %v879 = vld [vmem:[%s3 + $0x98] sm:$0xf]
      %v880 = vld [vmem:[%s3 + $0x9c] sm:$0xf]
      %v881 = vld [vmem:[%s3 + $0xa0] sm:$0xf]
      %v882 = vld [vmem:[%s3 + $0xa4] sm:$0xf]
      %v883 = vld [vmem:[%s3 + $0xa8] sm:$0xf]
      %v884 = vld [vmem:[%s3 + $0xac] sm:$0xf]
      %v885 = vld [vmem:[%s3 + $0xb0] sm:$0xf]
      %v886 = vld [vmem:[%s3 + $0xb4] sm:$0xf]
      %v887 = vld [vmem:[%s3 + $0xb8] sm:$0xf]
      %v888 = vld [vmem:[%s3 + $0xbc] sm:$0xf]
      %v889 = vld [vmem:[%s3 + $0xc0] sm:$0xf]
      %v890 = vld [vmem:[%s3 + $0xc4] sm:$0xf]
      %v891 = vld [vmem:[%s3 + $0xc8] sm:$0xf]
      %v892 = vld [vmem:[%s3 + $0xcc] sm:$0xf]
      %v893 = vld [vmem:[%s4] sm:$0x1]
      %v895 = vlaneseq
      %v896 = vshrl.u32 %v895, 7
      %v897 = vsub.s32 0, %v896
      %v898 = vrot.slane %v893, %v897
      %v904 = vunpack.c.l.b16 %v837
      %v905 = vunpack.c.h.b16 %v837
      %v906 = vunpack.c.l.b16 %v838
      %v907 = vunpack.c.h.b16 %v838
      %v908 = vunpack.c.l.b16 %v839
      %v909 = vunpack.c.h.b16 %v839
      %v910 = vunpack.c.l.b16 %v840
      %v911 = vunpack.c.h.b16 %v840
      %v912 = vpack.c.b16 %v908, %v904
      %v913 = vpack.c.b16 %v909, %v905
      %v914 = vpack.c.b16 %v910, %v906
      %v915 = vpack.c.b16 %v911, %v907
      %v971 = vunpack.c.l.b16 %v841
      %v972 = vunpack.c.l.b16 %v842
      %v973 = vunpack.c.l.b16 %v843
      %v974 = vunpack.c.l.b16 %v844
      %v975 = vunpack.c.l.b16 %v845
      %v976 = vunpack.c.l.b16 %v846
      %v977 = vunpack.c.l.b16 %v847
      %v978 = vunpack.c.l.b16 %v848
      %v979 = vunpack.c.l.b16 %v849
      %v980 = vunpack.c.l.b16 %v850
      %v981 = vunpack.c.l.b16 %v851
      %v982 = vunpack.c.l.b16 %v852
      %v983 = vunpack.c.l.b16 %v853
      %v984 = vunpack.c.l.b16 %v854
      %v985 = vunpack.c.l.b16 %v855
      %v986 = vunpack.c.l.b16 %v856
      %v987 = vunpack.c.l.b16 %v857
      %v988 = vunpack.c.l.b16 %v858
      %v989 = vunpack.c.l.b16 %v859
      %v990 = vunpack.c.l.b16 %v860
      %v991 = vunpack.c.l.b16 %v861
      %v992 = vunpack.c.l.b16 %v862
      %v993 = vunpack.c.l.b16 %v863
      %v994 = vunpack.c.l.b16 %v864
      %v995 = vunpack.c.l.b16 %v865
      %v996 = vunpack.c.l.b16 %v866
      %v997 = vunpack.c.l.b16 %v867
      %v998 = vunpack.c.l.b16 %v868
      %v999 = vunpack.c.l.b16 %v869
      %v1000 = vunpack.c.l.b16 %v870
      %v1001 = vunpack.c.l.b16 %v871
      %v1002 = vunpack.c.l.b16 %v872
      %v1003 = vunpack.c.l.b16 %v873
      %v1004 = vunpack.c.l.b16 %v874
      %v1005 = vunpack.c.l.b16 %v875
      %v1006 = vunpack.c.l.b16 %v876
      %v1007 = vunpack.c.l.b16 %v877
      %v1008 = vunpack.c.l.b16 %v878
      %v1009 = vunpack.c.l.b16 %v879
      %v1010 = vunpack.c.l.b16 %v880
      %v1011 = vunpack.c.l.b16 %v881
      %v1012 = vunpack.c.l.b16 %v882
      %v1013 = vunpack.c.l.b16 %v883
      %v1014 = vunpack.c.l.b16 %v884
      %v1015 = vunpack.c.l.b16 %v885
      %v1016 = vunpack.c.l.b16 %v886
      %v1017 = vunpack.c.l.b16 %v887
      %v1018 = vunpack.c.l.b16 %v888
      %v1019 = vunpack.c.l.b16 %v889
      %v1020 = vunpack.c.l.b16 %v890
      %v1021 = vunpack.c.l.b16 %v891
      %v1022 = vunpack.c.l.b16 %v892
      %v1023 = vpack.c.b16 %v972, %v971
      %v1024 = vpack.c.b16 %v974, %v973
      %v1025 = vpack.c.b16 %v976, %v975
      %v1026 = vpack.c.b16 %v978, %v977
      %v1027 = vpack.c.b16 %v980, %v979
      %v1028 = vpack.c.b16 %v982, %v981
      %v1029 = vpack.c.b16 %v984, %v983
      %v1030 = vpack.c.b16 %v986, %v985
      %v1031 = vpack.c.b16 %v988, %v987
      %v1032 = vpack.c.b16 %v990, %v989
      %v1033 = vpack.c.b16 %v992, %v991
      %v1034 = vpack.c.b16 %v994, %v993
      %v1035 = vpack.c.b16 %v996, %v995
      %v1036 = vpack.c.b16 %v998, %v997
      %v1037 = vpack.c.b16 %v1000, %v999
      %v1038 = vpack.c.b16 %v1002, %v1001
      %v1039 = vpack.c.b16 %v1004, %v1003
      %v1040 = vpack.c.b16 %v1006, %v1005
      %v1041 = vpack.c.b16 %v1008, %v1007
      %v1042 = vpack.c.b16 %v1010, %v1009
      %v1043 = vpack.c.b16 %v1012, %v1011
      %v1044 = vpack.c.b16 %v1014, %v1013
      %v1045 = vpack.c.b16 %v1016, %v1015
      %v1046 = vpack.c.b16 %v1018, %v1017
      %v1047 = vpack.c.b16 %v1020, %v1019
      %v1048 = vpack.c.b16 %v1022, %v1021
      %vm1075 = vcmask 261120
      %v1077 = vsel %vm1075, %v915, 0
      %1079 = vmatprep.subr.bf16.mxu0 0
      %1080 = vmatpush1.bf16.msra.mxu0 %v1030
      %1081 = vmatprep.subr.bf16.mxu0 0
      %1082 = vmatpush1.bf16.msra.mxu0 %v1029
      %1083 = vmatprep.subr.bf16.mxu0 0
      %1084 = vmatpush1.bf16.msra.mxu0 %v1028
      %1085 = vmatprep.subr.bf16.mxu0 0
      %1086 = vmatpush1.bf16.msra.mxu0 %v1027
      %1087 = vmatprep.subr.bf16.mxu0 0
      %1088 = vmatpush1.bf16.msra.mxu0 %v1026
      %1089 = vmatprep.subr.bf16.mxu0 0
      %1090 = vmatpush1.bf16.msra.mxu0 %v1025
      %1091 = vmatprep.subr.bf16.mxu0 0
      %1092 = vmatpush1.bf16.msra.mxu0 %v1024
      %1093 = vmatprep.subr.bf16.mxu0 0
      %1094 = vmatpush1.bf16.msra.mxu0 %v1023
      %1095 = vmatprep.subr.bf16.mxu0 0
      %1096 = vmatpush2.bf16.msra.mxu0 %v1038
      %1097 = vmatprep.subr.bf16.mxu0 0
      %1098 = vmatpush2.bf16.msra.mxu0 %v1037
      %1099 = vmatprep.subr.bf16.mxu0 0
      %1100 = vmatpush2.bf16.msra.mxu0 %v1036
      %1101 = vmatprep.subr.bf16.mxu0 0
      %1102 = vmatpush2.bf16.msra.mxu0 %v1035
      %1103 = vmatprep.subr.bf16.mxu0 0
      %1104 = vmatpush2.bf16.msra.mxu0 %v1034
      %1105 = vmatprep.subr.bf16.mxu0 0
      %1106 = vmatpush2.bf16.msra.mxu0 %v1033
      %1107 = vmatprep.subr.bf16.mxu0 0
      %1108 = vmatpush2.bf16.msra.mxu0 %v1032
      %1109 = vmatprep.subr.bf16.mxu0 0
      %1110 = vmatpush2.bf16.msra.mxu0 %v1031
      %1111 = vmatprep.mubr.bf16.mxu0 %v913
      %1112 = vmatmul.mubr.bf16.gmra.mxu0 %v912
      %v1113 = vpop.f32.mrf.mxu0
      %v1114 = vadd.f32 %v898, %v1113
      %v1115 = vpop.f32.mrf.mxu0
      %v1116 = vpop.f32.mrf.mxu0
      %v1117 = vadd.f32 %v898, %v1116
      %v1118 = vpop.f32.mrf.mxu0
      %1119 = vdwg.mxu0
      %1120 = vmatprep.subr.bf16.mxu0 0
      %1121 = vmatpush1.bf16.msra.mxu0 %v1046
      %1122 = vmatprep.subr.bf16.mxu0 0
      %1123 = vmatpush1.bf16.msra.mxu0 %v1045
      %1124 = vmatprep.subr.bf16.mxu0 0
      %1125 = vmatpush1.bf16.msra.mxu0 %v1044
      %1126 = vmatprep.subr.bf16.mxu0 0
      %1127 = vmatpush1.bf16.msra.mxu0 %v1043
      %1128 = vmatprep.subr.bf16.mxu0 0
      %1129 = vmatpush1.bf16.msra.mxu0 %v1042
      %1130 = vmatprep.subr.bf16.mxu0 0
      %1131 = vmatpush1.bf16.msra.mxu0 %v1041
      %1132 = vmatprep.subr.bf16.mxu0 0
      %1133 = vmatpush1.bf16.msra.mxu0 %v1040
      %1134 = vmatprep.subr.bf16.mxu0 0
      %1135 = vmatpush1.bf16.msra.mxu0 %v1039
      %1136 = vmatprep.subr.bf16.mxu0 0
      %1137 = vmatpush2.bf16.msra.mxu0 0
      %1138 = vmatprep.subr.bf16.mxu0 0
      %1139 = vmatpush2.bf16.msra.mxu0 0
      %1140 = vmatprep.subr.bf16.mxu0 0
      %1141 = vmatpush2.bf16.msra.mxu0 0
      %1142 = vmatprep.subr.bf16.mxu0 0
      %1143 = vmatpush2.bf16.msra.mxu0 0
      %1144 = vmatprep.subr.bf16.mxu0 0
      %1145 = vmatpush2.bf16.msra.mxu0 0
      %1146 = vmatprep.subr.bf16.mxu0 0
      %1147 = vmatpush2.bf16.msra.mxu0 0
      %1148 = vmatprep.subr.bf16.mxu0 0
      %1149 = vmatpush2.bf16.msra.mxu0 %v1048
      %1150 = vmatprep.subr.bf16.mxu0 0
      %1151 = vmatpush2.bf16.msra.mxu0 %v1047
      %1152 = vmatprep.mubr.bf16.mxu0 %v1077
      %1153 = vmatmul.mubr.bf16.gmra.mxu0 %v914
      %v1154 = vpop.f32.mrf.mxu0
      %v1155 = vadd.f32 %v1114, %v1154
      %v1156 = vpop.f32.mrf.mxu0
      %v1157 = vpop.f32.mrf.mxu0
      %v1158 = vadd.f32 %v1117, %v1157
      %v1159 = vpop.f32.mrf.mxu0
      %1160 = vdwg.mxu0
      %v1161 = vmax.f32 %v1155, 0.0
      %v1162 = vmax.f32 %v1158, 0.0
      %v1163 = vpack.c.bf16 %v1162, %v1161
      %v1164 = vld [vmem:[%s5] sm:$0xf]
      %v1165 = vld [vmem:[%s5 + $0x4] sm:$0xf]
      %v1166 = vld [vmem:[%s5 + $0x8] sm:$0xf]
      %v1167 = vld [vmem:[%s5 + $0xc] sm:$0xf]
      %v1168 = vld [vmem:[%s6] sm:$0x1]
      %v1170 = vlaneseq
      %v1171 = vshrl.u32 %v1170, 7
      %v1172 = vsub.s32 0, %v1171
      %v1173 = vrot.slane %v1168, %v1172
      %v1179 = vunpack.c.l.b16 %v1164
      %v1180 = vunpack.c.l.b16 %v1165
      %v1181 = vunpack.c.l.b16 %v1166
      %v1182 = vunpack.c.l.b16 %v1167
      %v1183 = vpack.c.b16 %v1180, %v1179
      %v1184 = vpack.c.b16 %v1182, %v1181
      %v1188 = vsel %vm1075, %v1163, 0
      %1190 = vmatprep.subr.bf16.mxu0 0
      %1191 = vmatpush1.bf16.msra.mxu0 0
      %1192 = vmatprep.subr.bf16.mxu0 0
      %1193 = vmatpush1.bf16.msra.mxu0 0
      %1194 = vmatprep.subr.bf16.mxu0 0
      %1195 = vmatpush1.bf16.msra.mxu0 0
      %1196 = vmatprep.subr.bf16.mxu0 0
      %1197 = vmatpush1.bf16.msra.mxu0 0
      %1198 = vmatprep.subr.bf16.mxu0 0
      %1199 = vmatpush1.bf16.msra.mxu0 0
      %1200 = vmatprep.subr.bf16.mxu0 0
      %1201 = vmatpush1.bf16.msra.mxu0 0
      %1202 = vmatprep.subr.bf16.mxu0 0
      %1203 = vmatpush1.bf16.msra.mxu0 %v1184
      %1204 = vmatprep.subr.bf16.mxu0 0
      %1205 = vmatpush1.bf16.msra.mxu0 %v1183
      %1206 = vmatprep.subr.bf16.mxu0 0
      %1207 = vmatpush2.bf16.msra.mxu0 0
      %1208 = vmatprep.subr.bf16.mxu0 0
      %1209 = vmatpush2.bf16.msra.mxu0 0
      %1210 = vmatprep.subr.bf16.mxu0 0
      %1211 = vmatpush2.bf16.msra.mxu0 0
      %1212 = vmatprep.subr.bf16.mxu0 0
      %1213 = vmatpush2.bf16.msra.mxu0 0
      %1214 = vmatprep.subr.bf16.mxu0 0
      %1215 = vmatpush2.bf16.msra.mxu0 0
      %1216 = vmatprep.subr.bf16.mxu0 0
      %1217 = vmatpush2.bf16.msra.mxu0 0
      %1218 = vmatprep.subr.bf16.mxu0 0
      %1219 = vmatpush2.bf16.msra.mxu0 0
      %1220 = vmatprep.subr.bf16.mxu0 0
      %1221 = vmatpush2.bf16.msra.mxu0 0
      %1222 = vmatprep.mubr.bf16.mxu0 0
      %1223 = vmatmul.mubr.bf16.gmra.mxu0 %v1188
      %v1224 = vpop.f32.mrf.mxu0
      %v1225 = vadd.f32 %v1173, %v1224
      %v1226 = vpop.f32.mrf.mxu0
      %v1227 = vpop.f32.mrf.mxu0
      %v1228 = vadd.f32 %v1173, %v1227
      %v1229 = vpop.f32.mrf.mxu0
      %1230 = vdwg.mxu0
      %v1231 = vpack.c.bf16 %v1228, %v1225
      %v1233 = vunpack.c.l.b16 %v1231
      %v1234 = vunpack.c.h.b16 %v1231
      %v1235 = vpack.c.b16 %v1233, %v1233
      %v1236 = vpack.c.b16 %v1234, %v1234
      %1239 = vst [vmem:[%s430] sm:$0xf] %v1235
      %1240 = vst [vmem:[%s430 + $0x4] sm:$0xf] %v1236
      %s1241 = smul.u32 2, %s23
      %p1242 = scmp.lt.s32.totalorder %s22, 1
      %s1243 = scalar_select %p1242, %s22, 1
      %p1244 = scmp.lt.s32.totalorder %s1241, 1
      %s1245 = scalar_select %p1244, %s1241, 1
      %s1246 = smul.addr %s1243, 2
      %s1247 = sadd.s32 %s1245, %s1246
      %s1248 = smul.addr %s1247, 4
      %s1249 = scalar_lea.vmem %s7, %s1248
      // Predicated region
      $region65: #{decoder_linear.1} parent=47 // pred_check
        %p1250 = pneg %p230
      $region66: #{decoder_linear.1} parent=47 // pred_check_branch
        %1252 = sbr.rel (%p1250) target = $region68
      $region67: #{decoder_linear.1} parent=47 // pred_region
        %s1253 = smul.u32 2, %s23
      $region68: #{decoder_linear.1} parent=47 // pred_fallthru
        _
    $region48: #{decoder_linear.1} parent=5 // pred_fallthru
      _
    %p1254 = scmp.le.s32.totalorder 2, %s13
    // Predicated region
    $region69: #{decoder_linear.1} parent=5 // pred_check
      %p1255 = pneg %p1254
    $region70: #{decoder_linear.1} parent=5 // pred_check_branch
      %1257 = sbr.rel (%p1255) target = $region72
    $region71: #{decoder_linear.1} parent=5 // pred_region
      %s1258 = ssub.s32 %s13, 2
      // Predicated region
      $region73: #{decoder_linear.1} parent=71 // pred_check
        %p1259 = pneg %p236
      $region74: #{decoder_linear.1} parent=71 // pred_check_branch
        %1261 = sbr.rel (%p1259) target = $region76
      $region75: #{decoder_linear.1} parent=71 // pred_region
        %s1262 = smul.u32 2, %s25
        %p1263 = scmp.lt.s32.totalorder %s24, 1
        %s1264 = scalar_select %p1263, %s24, 1
        %p1265 = scmp.lt.s32.totalorder %s1262, 1
        %s1266 = scalar_select %p1265, %s1262, 1
        %s1267 = smul.addr %s1264, 2
        %s1268 = sadd.s32 %s1266, %s1267
        %s1269 = smul.addr %s1268, 4
        %s1270 = scalar_lea.vmem %s7, %s1269
      $region76: #{decoder_linear.1} parent=71 // pred_fallthru
        _
    $region72: #{decoder_linear.1} parent=5 // pred_fallthru
      _
  $region6: #{decoder_linear.1} parent=0 // loop_footer
    %s17 = sadd.s32 1, %s13
  $region7: #{decoder_linear.1} parent=0 // loop_footer_branch
    %12 = sbr.rel target = $region3
  $region8: #{decoder_linear.1} parent=0 // loop_exit
    _

</llo_original>
